<compile_context>
chip_gen: v7x
topology: tpu7x:2x2x1
jax: 0.10.0
libtpu: 0.0.40
codegen_flags: <defaults>
</compile_context>

<pallas_src>
import functools

import jax
import jax.numpy as jnp
import numpy as np
from jax import lax
from jax.experimental import pallas as pl
from jax.experimental.pallas import tpu as pltpu


# ------------------------------- Pallas kernel -------------------------------
def _resblock_kernel(x_ref, w1_ref, b1_ref, g1_ref, be1_ref,
                     w2_ref, b2_ref, g2_ref, be2_ref, p_ref,
                     out_ref, pad_ref, *, kh_taps, inv_count, mxu_dtype):
    NB, H, WC = x_ref.shape
    KH = kh_taps
    ph = KH // 2

    # Zero only the halo rows (2*ph rows per sample).  Done unconditionally each
    # grid step (cheap) so it is correct under megacore 'parallel' sharding,
    # where each core owns its own scratch.
    halo = jnp.zeros((NB, ph, WC), mxu_dtype)
    pad_ref[:, :ph, :] = halo
    pad_ref[:, ph + H:, :] = halo

    def conv(x_val, w_ref, b_row):
        # x_val: (NB, H, WC) activations in lane-packed layout (lane = w*C + c).
        pad_ref[:, ph:ph + H, :] = x_val.astype(mxu_dtype)
        # im2col over the KH row taps only; kw taps + W zero-padding are already
        # folded into the block-banded weight.  One MXU matmul per conv with
        # M = NB*H, K = KH*WC, N = WC.
        patches = jnp.concatenate(
            [pad_ref[:, k:k + H, :] for k in range(KH)], axis=-1)   # (NB,H,KH*WC)
        patches = patches.reshape(NB * H, KH * WC)
        y = jnp.dot(patches, w_ref[...],
                    preferred_element_type=jnp.float32)             # (NB*H,WC) f32
        y = y + b_row                                                # bias (1, WC)
        return y.reshape(NB, H, WC)

    def groupnorm_relu(y, gamma_row, beta_row):
        # Per-sample sums of y and y*y over rows, pushed through the exact 0/1
        # group-membership matrix in ONE (2*NB, WC) @ (WC, WC) matmul; the
        # 1/(H*W*Cg) normalization is a scalar applied afterwards in f32.
        s1 = jnp.sum(y, axis=1)                                      # (NB, WC)
        s2 = jnp.sum(y * y, axis=1)                                  # (NB, WC)
        stacked = jnp.concatenate([s1, s2], axis=0).astype(mxu_dtype)
        stats = jnp.dot(stacked, p_ref[...],
                        preferred_element_type=jnp.float32) * inv_count
        mean = stats[:NB]                                            # (NB, WC)
        ex2 = stats[NB:]                                             # (NB, WC)
        var = jnp.maximum(ex2 - mean * mean, 0.0)
        # Fold gamma into the rsqrt scale: yn = y*scale + shift.
        scale = lax.rsqrt(var + 1e-5) * gamma_row                    # (NB, WC)
        shift = beta_row - mean * scale                              # (NB, WC)
        yn = y * scale[:, None, :] + shift[:, None, :]
        return jnp.maximum(yn, 0.0)

    x = x_ref[...]                                                   # f32 residual
    y = groupnorm_relu(conv(x, w1_ref, b1_ref[...]), g1_ref[...], be1_ref[...])
    y = groupnorm_relu(conv(y, w2_ref, b2_ref[...]), g2_ref[...], be2_ref[...])
    # Residual add + final relu in f32, cast to the (bf16 by default) output.
    out_ref[...] = jnp.maximum(x + y, 0.0).astype(out_ref.dtype)


# -------------------------- host-side packing helpers -------------------------
def _pack_conv_weight(w_hwio, width):
    """Fold the KW taps and W zero-padding of a (KH,KW,Cin,Cout) conv into a
    block-banded matrix of shape (KH*width*Cin, width*Cout) acting on the
    lane-packed layout (lane = w*C + c)."""
    KH, KW, Cin, Cout = w_hwio.shape
    pw = (KW - 1) // 2
    blocks = []
    for kh in range(KH):
        m = jnp.zeros((width * Cin, width * Cout), jnp.float32)
        for kw in range(KW):
            # selects w_in = w_out + kw - pw (out-of-range -> zero padding)
            sel = jnp.eye(width, k=-(kw - pw), dtype=jnp.float32)
            m = m + jnp.kron(sel, w_hwio[kh, kw])
        blocks.append(m)
    return jnp.concatenate(blocks, axis=0)


def _group_membership_matrix(width, channels, num_groups):
    """(WC, WC) exact 0/1 matrix: 1 iff lanes l, l' belong to the same GroupNorm
    group (lane index = w*C + c).  Exactly representable in bf16."""
    cg = channels // num_groups
    onehot_c = jnp.repeat(jnp.eye(num_groups, dtype=jnp.float32), cg, axis=0)  # (C,G)
    m = jnp.tile(onehot_c, (width, 1))                                         # (WC,G)
    return m @ m.T


def _tile_lanes(v, width):
    return jnp.tile(jnp.asarray(v, jnp.float32).reshape(-1), width).reshape(1, -1)


# --------------------------------- wrappers -----------------------------------
def residual_block_packed(x_packed, params, *, height, width, channels,
                          num_groups, batch_block=128,
                          mxu_dtype=jnp.bfloat16, out_dtype=jnp.bfloat16):
    """x_packed: (N, H, W*C) lane-packed activations (lane = w*C + c).
    Returns (N, H, W*C) in out_dtype.  Use this entry point to keep activations
    in the packed layout across a network and avoid per-block transposes."""
    w1, b1, g1, be1, w2, b2, g2, be2 = params
    N = x_packed.shape[0]
    H, W, C, G = height, width, channels, num_groups
    WC = W * C
    KH = w1.shape[0]

    wcat1 = _pack_conv_weight(w1, W).astype(mxu_dtype)
    wcat2 = _pack_conv_weight(w2, W).astype(mxu_dtype)
    b1p, g1p, be1p = (_tile_lanes(v, W) for v in (b1, g1, be1))
    b2p, g2p, be2p = (_tile_lanes(v, W) for v in (b2, g2, be2))
    pmat = _group_membership_matrix(W, C, G).astype(mxu_dtype)
    inv_count = 1.0 / float(H * W * (C // G))

    # Batch folding: NB samples per grid step (M = NB*H per conv matmul), with at
    # least 2 grid steps so both v7x TensorCores get work, capped by batch_block
    # so VMEM stays comfortable on the 64 MiB v7x.
    nb = max(1, min(batch_block, -(-N // 2)))
    n_pad = (-N) % nb
    if n_pad:
        x_packed = jnp.concatenate(
            [x_packed, jnp.zeros((n_pad, H, WC), x_packed.dtype)], axis=0)
    n_total = N + n_pad

    kernel = functools.partial(_resblock_kernel, kh_taps=KH,
                               inv_count=inv_count, mxu_dtype=mxu_dtype)

    def const_spec(shape):
        return pl.BlockSpec(shape, lambda n: (0,) * len(shape))

    mxu_bytes = np.dtype(mxu_dtype).itemsize
    out_bytes = np.dtype(out_dtype).itemsize
    block_act = nb * H * WC
    vmem_est = (block_act * 4 * 2                     # x block (f32, double-buffered)
                + block_act * out_bytes * 2           # out block (double-buffered)
                + nb * (H + KH - 1) * WC * mxu_bytes  # padded-row scratch
                + block_act * KH * mxu_bytes          # im2col patches
                + block_act * 4 * 3                   # f32 intermediates
                + 2 * KH * WC * WC * mxu_bytes * 2    # banded weights
                + WC * WC * mxu_bytes * 2)            # group-membership matrix
    vmem_limit = int(min(48 * 2**20, max(32 * 2**20, 2 * vmem_est)))

    out = pl.pallas_call(
        kernel,
        out_shape=jax.ShapeDtypeStruct((n_total, H, WC), out_dtype),
        grid=(n_total // nb,),
        in_specs=[
            pl.BlockSpec((nb, H, WC), lambda n: (n, 0, 0)),       # x, NB samples/step
            const_spec(wcat1.shape), const_spec((1, WC)),
            const_spec((1, WC)), const_spec((1, WC)),
            const_spec(wcat2.shape), const_spec((1, WC)),
            const_spec((1, WC)), const_spec((1, WC)),
            const_spec((WC, WC)),
        ],
        out_specs=pl.BlockSpec((nb, H, WC), lambda n: (n, 0, 0)),
        scratch_shapes=[pltpu.VMEM((nb, H + KH - 1, WC), mxu_dtype)],
        compiler_params=pltpu.CompilerParams(
            dimension_semantics=("parallel",),
            vmem_limit_bytes=vmem_limit),
    )(x_packed, wcat1, b1p, g1p, be1p, wcat2, b2p, g2p, be2p, pmat)

    return out[:N] if n_pad else out


def residual_block(x_nchw, params, *, num_groups, batch_block=128,
                   mxu_dtype=jnp.bfloat16, out_dtype=jnp.bfloat16):
    """NCHW convenience wrapper.  params = (w1,b1,gamma1,beta1,w2,b2,gamma2,beta2);
    conv weights are HWIO (PyTorch OIHW -> HWIO is w.transpose(2, 3, 1, 0))."""
    N, Cin, H, W = x_nchw.shape
    KH, KW, _, C = params[0].shape
    assert Cin == C, "stride=1 residual path requires in_planes == planes"
    # TODO(synk): in a full network, keep activations in the packed (N,H,W*C)
    # layout between ResidualBlocks instead of transposing around each call.
    x_packed = jnp.transpose(x_nchw, (0, 2, 3, 1)).reshape(N, H, W * C)
    out_packed = residual_block_packed(
        x_packed, params, height=H, width=W, channels=C, num_groups=num_groups,
        batch_block=batch_block, mxu_dtype=mxu_dtype, out_dtype=out_dtype)
    return jnp.transpose(out_packed.reshape(N, H, W, C), (0, 3, 1, 2))


# ---------------- plain-JAX reference (for correctness check) ----------------
def _conv_ref(x_nhwc, w_hwio, b):
    y = lax.conv_general_dilated(
        x_nhwc, w_hwio, window_strides=(1, 1), padding=((2, 2), (1, 1)),
        dimension_numbers=('NHWC', 'HWIO', 'NHWC'))
    return y + b.reshape(1, 1, 1, -1)


def _gn_ref(y, gamma, beta, G):
    N, H, W, C = y.shape
    yg = y.reshape(N, H, W, G, C // G)
    mean = yg.mean(axis=(1, 2, 4), keepdims=True)
    var = yg.var(axis=(1, 2, 4), keepdims=True)
    yn = ((yg - mean) / jnp.sqrt(var + 1e-5)).reshape(N, H, W, C)
    return yn * gamma.reshape(1, 1, 1, C) + beta.reshape(1, 1, 1, C)


def residual_block_ref(x_nchw, params, *, num_groups):
    w1, b1, g1, be1, w2, b2, g2, be2 = params
    x = jnp.transpose(x_nchw, (0, 2, 3, 1))
    y = jnp.maximum(_gn_ref(_conv_ref(x, w1, b1), g1, be1, num_groups), 0.0)
    y = jnp.maximum(_gn_ref(_conv_ref(y, w2, b2), g2, be2, num_groups), 0.0)
    out = jnp.maximum(x + y, 0.0)
    return jnp.transpose(out, (0, 3, 1, 2))


if __name__ == "__main__":
    # stride=1 residual requires in_planes == planes; planes=8 -> num_groups=1,
    # and W*C = 16*8 = 128 -> lane-dense layout.
    N, C, H, W = 2, 8, 16, 16
    NUM_GROUPS = C // 8
    KH, KW = 5, 3

    key = jax.random.PRNGKey(0)
    kx, kw1, kb1, kw2, kb2 = jax.random.split(key, 5)

    x = jax.random.normal(kx, (N, C, H, W), jnp.float32)
    w1 = 0.1 * jax.random.normal(kw1, (KH, KW, C, C), jnp.float32)   # HWIO
    b1 = 0.05 * jax.random.normal(kb1, (C,), jnp.float32)
    w2 = 0.1 * jax.random.normal(kw2, (KH, KW, C, C), jnp.float32)
    b2 = 0.05 * jax.random.normal(kb2, (C,), jnp.float32)
    g1 = jnp.ones((C,), jnp.float32)
    be1 = jnp.zeros((C,), jnp.float32)
    g2 = jnp.ones((C,), jnp.float32)
    be2 = jnp.zeros((C,), jnp.float32)
    params = (w1, b1, g1, be1, w2, b2, g2, be2)

    ref = jax.block_until_ready(residual_block_ref(x, params, num_groups=NUM_GROUPS))

    # f32 MXU operands + f32 output: tight correctness check vs XLA reference.
    out_f32 = jax.block_until_ready(
        residual_block(x, params, num_groups=NUM_GROUPS,
                       mxu_dtype=jnp.float32, out_dtype=jnp.float32))
    np.testing.assert_allclose(np.asarray(out_f32), np.asarray(ref),
                               rtol=1e-3, atol=1e-3)

    # Default perf path (bf16 MXU operands and bf16 output, f32 accumulate and
    # f32 GroupNorm/residual math): loose tolerance for bf16 operand rounding.
    out_bf16 = jax.block_until_ready(
        residual_block(x, params, num_groups=NUM_GROUPS))
    np.testing.assert_allclose(np.asarray(out_bf16.astype(jnp.float32)),
                               np.asarray(ref), rtol=1e-1, atol=1e-1)

    print("KERNEL_OK")
</pallas_src>

<mosaic_0001>
module attributes {stable_mosaic.version = 11 : i64} {
  func.func @_resblock_kernel(%arg0: i32, %arg1: memref<1x16x128xf32, #tpu.memory_space<vmem>>, %arg2: memref<640x128xf32, #tpu.memory_space<vmem>>, %arg3: memref<1x128xf32, #tpu.memory_space<vmem>>, %arg4: memref<1x128xf32, #tpu.memory_space<vmem>>, %arg5: memref<1x128xf32, #tpu.memory_space<vmem>>, %arg6: memref<640x128xf32, #tpu.memory_space<vmem>>, %arg7: memref<1x128xf32, #tpu.memory_space<vmem>>, %arg8: memref<1x128xf32, #tpu.memory_space<vmem>>, %arg9: memref<1x128xf32, #tpu.memory_space<vmem>>, %arg10: memref<128x128xf32, #tpu.memory_space<vmem>>, %arg11: memref<1x16x128xf32, #tpu.memory_space<vmem>>, %arg12: memref<1x20x128xf32, #tpu.memory_space<vmem>>) attributes {dimension_semantics = [#tpu.dimension_semantics<parallel>], iteration_bounds = array<i64: 2>, scalar_prefetch = 0 : i64, scratch_operands = 1 : i64, tpu.core_type = #tpu.core_type<tc>, window_params = [{transform_indices = @transform_0, window_bounds = array<i64: 1, 16, 128>}, {pipeline_mode = #tpu.pipeline_mode<synchronous>, transform_indices = @transform_1, window_bounds = array<i64: 640, 128>}, {pipeline_mode = #tpu.pipeline_mode<synchronous>, transform_indices = @transform_2, window_bounds = array<i64: 1, 128>}, {pipeline_mode = #tpu.pipeline_mode<synchronous>, transform_indices = @transform_3, window_bounds = array<i64: 1, 128>}, {pipeline_mode = #tpu.pipeline_mode<synchronous>, transform_indices = @transform_4, window_bounds = array<i64: 1, 128>}, {pipeline_mode = #tpu.pipeline_mode<synchronous>, transform_indices = @transform_5, window_bounds = array<i64: 640, 128>}, {pipeline_mode = #tpu.pipeline_mode<synchronous>, transform_indices = @transform_6, window_bounds = array<i64: 1, 128>}, {pipeline_mode = #tpu.pipeline_mode<synchronous>, transform_indices = @transform_7, window_bounds = array<i64: 1, 128>}, {pipeline_mode = #tpu.pipeline_mode<synchronous>, transform_indices = @transform_8, window_bounds = array<i64: 1, 128>}, {pipeline_mode = #tpu.pipeline_mode<synchronous>, transform_indices = @transform_9, window_bounds = array<i64: 128, 128>}, {transform_indices = @transform_10, window_bounds = array<i64: 1, 16, 128>}]} {
    %cst = arith.constant 0.000000e+00 : f32
    %0 = vector.broadcast %cst : f32 to vector<1x2x128xf32>
    %c0 = arith.constant 0 : index
    %c0_0 = arith.constant 0 : index
    %c0_1 = arith.constant 0 : index
    %1 = vector.load %arg12[%c0, %c0_0, %c0_1] : memref<1x20x128xf32, #tpu.memory_space<vmem>>, vector<1x2x128xf32>
    tpu.vector_store %arg12[%c0, %c0_0, %c0_1], %0 {strides = array<i32>} : memref<1x20x128xf32, #tpu.memory_space<vmem>>, vector<1x2x128xf32>,
    %c0_2 = arith.constant 0 : index
    %c18 = arith.constant 18 : index
    %c0_3 = arith.constant 0 : index
    %2 = vector.load %arg12[%c0_2, %c18, %c0_3] : memref<1x20x128xf32, #tpu.memory_space<vmem>>, vector<1x2x128xf32>
    tpu.vector_store %arg12[%c0_2, %c18, %c0_3], %0 {strides = array<i32>} : memref<1x20x128xf32, #tpu.memory_space<vmem>>, vector<1x2x128xf32>,
    %c0_4 = arith.constant 0 : index
    %c0_5 = arith.constant 0 : index
    %c0_6 = arith.constant 0 : index
    %3 = vector.load %arg1[%c0_4, %c0_5, %c0_6] : memref<1x16x128xf32, #tpu.memory_space<vmem>>, vector<1x16x128xf32>
    %c0_7 = arith.constant 0 : index
    %c0_8 = arith.constant 0 : index
    %4 = vector.load %arg3[%c0_7, %c0_8] : memref<1x128xf32, #tpu.memory_space<vmem>>, vector<1x128xf32>
    %c0_9 = arith.constant 0 : index
    %c2 = arith.constant 2 : index
    %c0_10 = arith.constant 0 : index
    %5 = vector.load %arg12[%c0_9, %c2, %c0_10] : memref<1x20x128xf32, #tpu.memory_space<vmem>>, vector<1x16x128xf32>
    tpu.vector_store %arg12[%c0_9, %c2, %c0_10], %3 {strides = array<i32>} : memref<1x20x128xf32, #tpu.memory_space<vmem>>, vector<1x16x128xf32>,
    %c0_11 = arith.constant 0 : index
    %c0_12 = arith.constant 0 : index
    %c0_13 = arith.constant 0 : index
    %6 = vector.load %arg12[%c0_11, %c0_12, %c0_13] : memref<1x20x128xf32, #tpu.memory_space<vmem>>, vector<1x16x128xf32>
    %c0_14 = arith.constant 0 : index
    %c1 = arith.constant 1 : index
    %c0_15 = arith.constant 0 : index
    %7 = vector.load %arg12[%c0_14, %c1, %c0_15] : memref<1x20x128xf32, #tpu.memory_space<vmem>>, vector<1x16x128xf32>
    %c0_16 = arith.constant 0 : index
    %c2_17 = arith.constant 2 : index
    %c0_18 = arith.constant 0 : index
    %8 = vector.load %arg12[%c0_16, %c2_17, %c0_18] : memref<1x20x128xf32, #tpu.memory_space<vmem>>, vector<1x16x128xf32>
    %c0_19 = arith.constant 0 : index
    %c3 = arith.constant 3 : index
    %c0_20 = arith.constant 0 : index
    %9 = vector.load %arg12[%c0_19, %c3, %c0_20] : memref<1x20x128xf32, #tpu.memory_space<vmem>>, vector<1x16x128xf32>
    %c0_21 = arith.constant 0 : index
    %c4 = arith.constant 4 : index
    %c0_22 = arith.constant 0 : index
    %10 = vector.load %arg12[%c0_21, %c4, %c0_22] : memref<1x20x128xf32, #tpu.memory_space<vmem>>, vector<1x16x128xf32>
    %11 = tpu.concatenate %6, %7, %8, %9, %10 in 2 : vector<1x16x128xf32>, vector<1x16x128xf32>, vector<1x16x128xf32>, vector<1x16x128xf32>, vector<1x16x128xf32> -> vector<1x16x640xf32>
    %12 = vector.shape_cast %11 : vector<1x16x640xf32> to vector<16x640xf32>
    %c0_23 = arith.constant 0 : index
    %c0_24 = arith.constant 0 : index
    %13 = vector.load %arg2[%c0_23, %c0_24] : memref<640x128xf32, #tpu.memory_space<vmem>>, vector<640x128xf32>
    %cst_25 = arith.constant dense<0.000000e+00> : vector<16x128xf32>
    %14 = tpu.matmul %12, %13, %cst_25 {dimension_numbers = #tpu.dot_dimension_numbers<[1], [0], [0], [1], [0, 0, 1, 1], [], []>} : vector<16x640xf32>, vector<640x128xf32>, vector<16x128xf32> -> vector<16x128xf32>
    %15 = vector.broadcast %4 : vector<1x128xf32> to vector<16x128xf32>
    %16 = arith.addf %14, %15 : vector<16x128xf32>
    %17 = vector.shape_cast %16 : vector<16x128xf32> to vector<1x16x128xf32>
    %c0_26 = arith.constant 0 : index
    %c0_27 = arith.constant 0 : index
    %18 = vector.load %arg4[%c0_26, %c0_27] : memref<1x128xf32, #tpu.memory_space<vmem>>, vector<1x128xf32>
    %c0_28 = arith.constant 0 : index
    %c0_29 = arith.constant 0 : index
    %19 = vector.load %arg5[%c0_28, %c0_29] : memref<1x128xf32, #tpu.memory_space<vmem>>, vector<1x128xf32>
    %cst_30 = arith.constant dense<0.000000e+00> : vector<1x128xf32>
    %20 = vector.multi_reduction <add>, %17, %cst_30 [1] : vector<1x16x128xf32> to vector<1x128xf32>
    %21 = arith.mulf %17, %17 : vector<1x16x128xf32>
    %cst_31 = arith.constant dense<0.000000e+00> : vector<1x128xf32>
    %22 = vector.multi_reduction <add>, %21, %cst_31 [1] : vector<1x16x128xf32> to vector<1x128xf32>
    %23 = tpu.concatenate %20, %22 in 0 : vector<1x128xf32>, vector<1x128xf32> -> vector<2x128xf32>
    %c0_32 = arith.constant 0 : index
    %c0_33 = arith.constant 0 : index
    %24 = vector.load %arg10[%c0_32, %c0_33] : memref<128x128xf32, #tpu.memory_space<vmem>>, vector<128x128xf32>
    %cst_34 = arith.constant dense<0.000000e+00> : vector<2x128xf32>
    %25 = tpu.matmul %23, %24, %cst_34 {dimension_numbers = #tpu.dot_dimension_numbers<[1], [0], [0], [1], [0, 0, 1, 1], [], []>} : vector<2x128xf32>, vector<128x128xf32>, vector<2x128xf32> -> vector<2x128xf32>
    %cst_35 = arith.constant 4.8828125E-4 : f32
    %26 = vector.broadcast %cst_35 : f32 to vector<2x128xf32>
    %27 = arith.mulf %25, %26 : vector<2x128xf32>
    %28 = vector.extract_strided_slice %27 {offsets = [0, 0], sizes = [1, 128], strides = [1, 1]} : vector<2x128xf32> to vector<1x128xf32>
    %29 = vector.extract_strided_slice %27 {offsets = [1, 0], sizes = [1, 128], strides = [1, 1]} : vector<2x128xf32> to vector<1x128xf32>
    %30 = arith.mulf %28, %28 : vector<1x128xf32>
    %31 = arith.subf %29, %30 : vector<1x128xf32>
    %cst_36 = arith.constant 0.000000e+00 : f32
    %32 = vector.broadcast %cst_36 : f32 to vector<1x128xf32>
    %33 = arith.maximumf %31, %32 : vector<1x128xf32>
    %cst_37 = arith.constant 9.99999974E-6 : f32
    %34 = vector.broadcast %cst_37 : f32 to vector<1x128xf32>
    %35 = arith.addf %33, %34 : vector<1x128xf32>
    %36 = math.rsqrt %35 : vector<1x128xf32>
    %37 = arith.mulf %36, %18 : vector<1x128xf32>
    %38 = arith.mulf %28, %37 : vector<1x128xf32>
    %39 = arith.subf %19, %38 : vector<1x128xf32>
    %40 = vector.shape_cast %37 : vector<1x128xf32> to vector<1x1x128xf32>
    %41 = vector.broadcast %40 : vector<1x1x128xf32> to vector<1x16x128xf32>
    %42 = arith.mulf %17, %41 : vector<1x16x128xf32>
    %43 = vector.shape_cast %39 : vector<1x128xf32> to vector<1x1x128xf32>
    %44 = vector.broadcast %43 : vector<1x1x128xf32> to vector<1x16x128xf32>
    %45 = arith.addf %42, %44 : vector<1x16x128xf32>
    %cst_38 = arith.constant 0.000000e+00 : f32
    %46 = vector.broadcast %cst_38 : f32 to vector<1x16x128xf32>
    %47 = arith.maximumf %45, %46 : vector<1x16x128xf32>
    %c0_39 = arith.constant 0 : index
    %c0_40 = arith.constant 0 : index
    %48 = vector.load %arg7[%c0_39, %c0_40] : memref<1x128xf32, #tpu.memory_space<vmem>>, vector<1x128xf32>
    %c0_41 = arith.constant 0 : index
    %c2_42 = arith.constant 2 : index
    %c0_43 = arith.constant 0 : index
    %49 = vector.load %arg12[%c0_41, %c2_42, %c0_43] : memref<1x20x128xf32, #tpu.memory_space<vmem>>, vector<1x16x128xf32>
    tpu.vector_store %arg12[%c0_41, %c2_42, %c0_43], %47 {strides = array<i32>} : memref<1x20x128xf32, #tpu.memory_space<vmem>>, vector<1x16x128xf32>,
    %c0_44 = arith.constant 0 : index
    %c0_45 = arith.constant 0 : index
    %c0_46 = arith.constant 0 : index
    %50 = vector.load %arg12[%c0_44, %c0_45, %c0_46] : memref<1x20x128xf32, #tpu.memory_space<vmem>>, vector<1x16x128xf32>
    %c0_47 = arith.constant 0 : index
    %c1_48 = arith.constant 1 : index
    %c0_49 = arith.constant 0 : index
    %51 = vector.load %arg12[%c0_47, %c1_48, %c0_49] : memref<1x20x128xf32, #tpu.memory_space<vmem>>, vector<1x16x128xf32>
    %c0_50 = arith.constant 0 : index
    %c2_51 = arith.constant 2 : index
    %c0_52 = arith.constant 0 : index
    %52 = vector.load %arg12[%c0_50, %c2_51, %c0_52] : memref<1x20x128xf32, #tpu.memory_space<vmem>>, vector<1x16x128xf32>
    %c0_53 = arith.constant 0 : index
    %c3_54 = arith.constant 3 : index
    %c0_55 = arith.constant 0 : index
    %53 = vector.load %arg12[%c0_53, %c3_54, %c0_55] : memref<1x20x128xf32, #tpu.memory_space<vmem>>, vector<1x16x128xf32>
    %c0_56 = arith.constant 0 : index
    %c4_57 = arith.constant 4 : index
    %c0_58 = arith.constant 0 : index
    %54 = vector.load %arg12[%c0_56, %c4_57, %c0_58] : memref<1x20x128xf32, #tpu.memory_space<vmem>>, vector<1x16x128xf32>
    %55 = tpu.concatenate %50, %51, %52, %53, %54 in 2 : vector<1x16x128xf32>, vector<1x16x128xf32>, vector<1x16x128xf32>, vector<1x16x128xf32>, vector<1x16x128xf32> -> vector<1x16x640xf32>
    %56 = vector.shape_cast %55 : vector<1x16x640xf32> to vector<16x640xf32>
    %c0_59 = arith.constant 0 : index
    %c0_60 = arith.constant 0 : index
    %57 = vector.load %arg6[%c0_59, %c0_60] : memref<640x128xf32, #tpu.memory_space<vmem>>, vector<640x128xf32>
    %cst_61 = arith.constant dense<0.000000e+00> : vector<16x128xf32>
    %58 = tpu.matmul %56, %57, %cst_61 {dimension_numbers = #tpu.dot_dimension_numbers<[1], [0], [0], [1], [0, 0, 1, 1], [], []>} : vector<16x640xf32>, vector<640x128xf32>, vector<16x128xf32> -> vector<16x128xf32>
    %59 = vector.broadcast %48 : vector<1x128xf32> to vector<16x128xf32>
    %60 = arith.addf %58, %59 : vector<16x128xf32>
    %61 = vector.shape_cast %60 : vector<16x128xf32> to vector<1x16x128xf32>
    %c0_62 = arith.constant 0 : index
    %c0_63 = arith.constant 0 : index
    %62 = vector.load %arg8[%c0_62, %c0_63] : memref<1x128xf32, #tpu.memory_space<vmem>>, vector<1x128xf32>
    %c0_64 = arith.constant 0 : index
    %c0_65 = arith.constant 0 : index
    %63 = vector.load %arg9[%c0_64, %c0_65] : memref<1x128xf32, #tpu.memory_space<vmem>>, vector<1x128xf32>
    %cst_66 = arith.constant dense<0.000000e+00> : vector<1x128xf32>
    %64 = vector.multi_reduction <add>, %61, %cst_66 [1] : vector<1x16x128xf32> to vector<1x128xf32>
    %65 = arith.mulf %61, %61 : vector<1x16x128xf32>
    %cst_67 = arith.constant dense<0.000000e+00> : vector<1x128xf32>
    %66 = vector.multi_reduction <add>, %65, %cst_67 [1] : vector<1x16x128xf32> to vector<1x128xf32>
    %67 = tpu.concatenate %64, %66 in 0 : vector<1x128xf32>, vector<1x128xf32> -> vector<2x128xf32>
    %c0_68 = arith.constant 0 : index
    %c0_69 = arith.constant 0 : index
    %68 = vector.load %arg10[%c0_68, %c0_69] : memref<128x128xf32, #tpu.memory_space<vmem>>, vector<128x128xf32>
    %cst_70 = arith.constant dense<0.000000e+00> : vector<2x128xf32>
    %69 = tpu.matmul %67, %68, %cst_70 {dimension_numbers = #tpu.dot_dimension_numbers<[1], [0], [0], [1], [0, 0, 1, 1], [], []>} : vector<2x128xf32>, vector<128x128xf32>, vector<2x128xf32> -> vector<2x128xf32>
    %cst_71 = arith.constant 4.8828125E-4 : f32
    %70 = vector.broadcast %cst_71 : f32 to vector<2x128xf32>
    %71 = arith.mulf %69, %70 : vector<2x128xf32>
    %72 = vector.extract_strided_slice %71 {offsets = [0, 0], sizes = [1, 128], strides = [1, 1]} : vector<2x128xf32> to vector<1x128xf32>
    %73 = vector.extract_strided_slice %71 {offsets = [1, 0], sizes = [1, 128], strides = [1, 1]} : vector<2x128xf32> to vector<1x128xf32>
    %74 = arith.mulf %72, %72 : vector<1x128xf32>
    %75 = arith.subf %73, %74 : vector<1x128xf32>
    %cst_72 = arith.constant 0.000000e+00 : f32
    %76 = vector.broadcast %cst_72 : f32 to vector<1x128xf32>
    %77 = arith.maximumf %75, %76 : vector<1x128xf32>
    %cst_73 = arith.constant 9.99999974E-6 : f32
    %78 = vector.broadcast %cst_73 : f32 to vector<1x128xf32>
    %79 = arith.addf %77, %78 : vector<1x128xf32>
    %80 = math.rsqrt %79 : vector<1x128xf32>
    %81 = arith.mulf %80, %62 : vector<1x128xf32>
    %82 = arith.mulf %72, %81 : vector<1x128xf32>
    %83 = arith.subf %63, %82 : vector<1x128xf32>
    %84 = vector.shape_cast %81 : vector<1x128xf32> to vector<1x1x128xf32>
    %85 = vector.broadcast %84 : vector<1x1x128xf32> to vector<1x16x128xf32>
    %86 = arith.mulf %61, %85 : vector<1x16x128xf32>
    %87 = vector.shape_cast %83 : vector<1x128xf32> to vector<1x1x128xf32>
    %88 = vector.broadcast %87 : vector<1x1x128xf32> to vector<1x16x128xf32>
    %89 = arith.addf %86, %88 : vector<1x16x128xf32>
    %cst_74 = arith.constant 0.000000e+00 : f32
    %90 = vector.broadcast %cst_74 : f32 to vector<1x16x128xf32>
    %91 = arith.maximumf %89, %90 : vector<1x16x128xf32>
    %92 = arith.addf %3, %91 : vector<1x16x128xf32>
    %cst_75 = arith.constant 0.000000e+00 : f32
    %93 = vector.broadcast %cst_75 : f32 to vector<1x16x128xf32>
    %94 = arith.maximumf %92, %93 : vector<1x16x128xf32>
    %c0_76 = arith.constant 0 : index
    %c0_77 = arith.constant 0 : index
    %c0_78 = arith.constant 0 : index
    %95 = vector.load %arg11[%c0_76, %c0_77, %c0_78] : memref<1x16x128xf32, #tpu.memory_space<vmem>>, vector<1x16x128xf32>
    tpu.vector_store %arg11[%c0_76, %c0_77, %c0_78], %94 {strides = array<i32>} : memref<1x16x128xf32, #tpu.memory_space<vmem>>, vector<1x16x128xf32>,
    return
  }
  func.func @transform_0(%arg0: i32) -> (i32, i32, i32) {
    %c0_i32 = arith.constant 0 : i32
    %c0_i32_0 = arith.constant 0 : i32
    %c0_i32_1 = arith.constant 0 : i32
    return %arg0, %c0_i32, %c0_i32_0 : i32, i32, i32
  }
  func.func @transform_1(%arg0: i32) -> (i32, i32) {
    %c0_i32 = arith.constant 0 : i32
    %c0_i32_0 = arith.constant 0 : i32
    %c0_i32_1 = arith.constant 0 : i32
    return %c0_i32, %c0_i32_0 : i32, i32
  }
  func.func @transform_2(%arg0: i32) -> (i32, i32) {
    %c0_i32 = arith.constant 0 : i32
    %c0_i32_0 = arith.constant 0 : i32
    %c0_i32_1 = arith.constant 0 : i32
    return %c0_i32, %c0_i32_0 : i32, i32
  }
  func.func @transform_3(%arg0: i32) -> (i32, i32) {
    %c0_i32 = arith.constant 0 : i32
    %c0_i32_0 = arith.constant 0 : i32
    %c0_i32_1 = arith.constant 0 : i32
    return %c0_i32, %c0_i32_0 : i32, i32
  }
  func.func @transform_4(%arg0: i32) -> (i32, i32) {
    %c0_i32 = arith.constant 0 : i32
    %c0_i32_0 = arith.constant 0 : i32
    %c0_i32_1 = arith.constant 0 : i32
    return %c0_i32, %c0_i32_0 : i32, i32
  }
  func.func @transform_5(%arg0: i32) -> (i32, i32) {
    %c0_i32 = arith.constant 0 : i32
    %c0_i32_0 = arith.constant 0 : i32
    %c0_i32_1 = arith.constant 0 : i32
    return %c0_i32, %c0_i32_0 : i32, i32
  }
  func.func @transform_6(%arg0: i32) -> (i32, i32) {
    %c0_i32 = arith.constant 0 : i32
    %c0_i32_0 = arith.constant 0 : i32
    %c0_i32_1 = arith.constant 0 : i32
    return %c0_i32, %c0_i32_0 : i32, i32
  }
  func.func @transform_7(%arg0: i32) -> (i32, i32) {
    %c0_i32 = arith.constant 0 : i32
    %c0_i32_0 = arith.constant 0 : i32
    %c0_i32_1 = arith.constant 0 : i32
    return %c0_i32, %c0_i32_0 : i32, i32
  }
  func.func @transform_8(%arg0: i32) -> (i32, i32) {
    %c0_i32 = arith.constant 0 : i32
    %c0_i32_0 = arith.constant 0 : i32
    %c0_i32_1 = arith.constant 0 : i32
    return %c0_i32, %c0_i32_0 : i32, i32
  }
  func.func @transform_9(%arg0: i32) -> (i32, i32) {
    %c0_i32 = arith.constant 0 : i32
    %c0_i32_0 = arith.constant 0 : i32
    %c0_i32_1 = arith.constant 0 : i32
    return %c0_i32, %c0_i32_0 : i32, i32
  }
  func.func @transform_10(%arg0: i32) -> (i32, i32, i32) {
    %c0_i32 = arith.constant 0 : i32
    %c0_i32_0 = arith.constant 0 : i32
    %c0_i32_1 = arith.constant 0 : i32
    return %arg0, %c0_i32, %c0_i32_0 : i32, i32, i32
  }
}

</mosaic_0001>

<llo_original>
// kernel: tpu_custom_call.1
$region0: #{tpu_custom_call.1}
  #allocation0 [shape = 'u32[]', space=smem, size = 0x4, offset = 0x4, fixed_abs, tag = 'smem constant byte address 0x4 - core index']
  #allocation1 [shape = 'u32[144,128]{1,0:T(1,128)}', space=vmem, size = 0x12000, scoped, tag = 'internal scratch']
  #allocation2 [shape = 'f32[1,20,128]{2,1,0:T(8,128)}', space=vmem, size = 0x3000, scoped, tag = 'scratch operand']
  %s0 = inlined_call_operand.hbm [shape: f32[2,16,128], index: 0, kind: input, shape index: {}]
  %s1 = inlined_call_operand.hbm [shape: f32[640,128], index: 1, kind: input, shape index: {}]
  %s2 = inlined_call_operand.vmem [shape: f32[1,128], index: 2, kind: input, shape index: {}]
  %s3 = inlined_call_operand.vmem [shape: f32[1,128], index: 3, kind: input, shape index: {}]
  %s4 = inlined_call_operand.vmem [shape: f32[1,128], index: 4, kind: input, shape index: {}]
  %s5 = inlined_call_operand.hbm [shape: f32[640,128], index: 5, kind: input, shape index: {}]
  %s6 = inlined_call_operand.vmem [shape: f32[1,128], index: 6, kind: input, shape index: {}]
  %s7 = inlined_call_operand.vmem [shape: f32[1,128], index: 7, kind: input, shape index: {}]
  %s8 = inlined_call_operand.vmem [shape: f32[1,128], index: 8, kind: input, shape index: {}]
  %s9 = inlined_call_operand.hbm [shape: f32[128,128], index: 9, kind: input, shape index: {}]
  %s10 = inlined_call_operand.hbm [shape: f32[2,16,128], index: 10, kind: output, shape index: {}]
  %s11 = sld [smem:[#allocation0]]
  $region89: #{tpu_custom_call.1} parent=0
    _
  %s13 = ssub.s32 1, %s11
  %s14 = scalar_select 0, %s13, %s11
  $region1: #{tpu_custom_call.1} parent=0
    #allocation3 [shape = 'u8[16384]{0}', space=vmem, size = 0x4000, scoped, tag = 'input window, operand 0']
    #allocation4 [shape = 's32[2]{0}', space=sflag, size = 0x8, scoped, tag = 'scoped memory for tpu_custom_call.1']
    #allocation5 [shape = 's32[2]{0}', space=sflag, size = 0x8, scoped, tag = 'scoped memory for tpu_custom_call.1']
    #allocation6 [shape = 'u8[327680]{0}', space=vmem, size = 0x50000, scoped, tag = 'input window, operand 1, single buffered']
    #allocation7 [shape = 's32[1]{0}', space=sflag, size = 0x4, scoped, tag = 'scoped memory for tpu_custom_call.1']
    #allocation8 [shape = 'u8[327680]{0}', space=vmem, size = 0x50000, scoped, tag = 'input window, operand 5, single buffered']
    #allocation9 [shape = 'u8[65536]{0}', space=vmem, size = 0x10000, scoped, tag = 'input window, operand 9, single buffered']
    #allocation10 [shape = 's32[1]{0}', space=sflag, size = 0x4, scoped, tag = 'scoped memory for tpu_custom_call.1']
    #allocation11 [shape = 'u8[16384]{0}', space=vmem, size = 0x4000, scoped, tag = 'output window, operand 0']
    %15 = vsyncpa [#allocation4], 0
    %s16 = scalar_lea.sflag [#allocation4], 1
    %17 = vsyncpa %s16, 0
    %18 = vsyncpa [#allocation7], 0
    %19 = vsyncpa [#allocation10], 0
    %20 = vsyncpa [#allocation5], 0
    %s21 = scalar_lea.sflag [#allocation5], 1
    %22 = vsyncpa %s21, 0
    loop: start=0, step=1, limit=4
    $region2: #{tpu_custom_call.1} parent=1 // loop_pre_header
      _
    $region3: #{tpu_custom_call.1} parent=1 // loop_header
      %s24 = sphi 0, %s28
      %p25 = scmp.ge.s32.totalorder %s24, 4
      %s34 = sphi 0, %s36
      %s37 = sphi 0, %s34
      %s38 = sphi 0, %s37
      %s54 = sphi 0, %s38
      %s58 = sphi 0, %s58
      %s60 = sphi 0, %s58
      %s61 = sphi 0, %s60
      %s75 = sphi 0, %s61
      %s79 = sphi 0, %s79
      %s81 = sphi 0, %s79
      %s82 = sphi 0, %s81
      %s96 = sphi 0, %s82
      %s100 = sphi 0, %s100
      %s102 = sphi 0, %s100
      %s103 = sphi 0, %s102
      %s117 = sphi 0, %s103
      %s121 = sphi 0, %s121
      %s123 = sphi 0, %s121
      %s124 = sphi 0, %s123
      %s138 = sphi 0, %s124
      %s142 = sphi 0, %s142
      %s144 = sphi 0, %s142
      %s145 = sphi 0, %s144
      %s159 = sphi 0, %s145
      %s163 = sphi 0, %s163
      %s165 = sphi 0, %s163
      %s166 = sphi 0, %s165
      %s180 = sphi 0, %s166
      %s184 = sphi 0, %s184
      %s186 = sphi 0, %s184
      %s187 = sphi 0, %s186
      %s201 = sphi 0, %s187
      %s205 = sphi 0, %s205
      %s207 = sphi 0, %s205
      %s208 = sphi 0, %s207
      %s222 = sphi 0, %s208
      %s226 = sphi 0, %s226
      %s228 = sphi 0, %s226
      %s229 = sphi 0, %s228
      %s243 = sphi 0, %s229
      %s249 = sphi 0, %s251
      %s252 = sphi 0, %s249
      %s253 = sphi 0, %s252
      %s269 = sphi 0, %s253
    $region4: #{tpu_custom_call.1} parent=1 // loop_header_branch
      %27 = sbr.rel (%p25) target = $region8
    $region5: #{tpu_custom_call.1} parent=1 // loop_body
      %s29 = ssub.s32 %s24, 1
      %s30 = ssub.s32 %s24, 2
      %s31 = sadd.s32 %s24, 1
      %s32 = ssub.s32 %s24, %s31
      %p33 = scmp.eq.s32.totalorder %s32, 0
      %s35 = sadd.s32 %s34, 1
      %s36 = scalar_select %p33, %s34, %s35
      %p39 = pneg %p33
      %p40 = scmp.eq.s32.totalorder %s24, 1
      %p41 = por %p39, %p40
      %p42 = scmp.ne.s32.totalorder %s34, %s37
      %p43 = scmp.eq.s32.totalorder %s24, 0
      %p44 = por %p42, %p43
      %p45 = scmp.ne.s32.totalorder %s34, %s37
      %p46 = scmp.eq.s32.totalorder %s29, 1
      %p47 = por %p45, %p46
      %p48 = scmp.ne.s32.totalorder %s37, %s38
      %p49 = scmp.eq.s32.totalorder %s29, 0
      %p50 = por %p48, %p49
      %p51 = scmp.ne.s32.totalorder %s37, %s38
      %p52 = scmp.eq.s32.totalorder %s30, 1
      %p53 = por %p51, %p52
      %p55 = scmp.ne.s32.totalorder %s38, %s54
      %p56 = scmp.eq.s32.totalorder %s30, 0
      %p57 = por %p55, %p56
      %s59 = sadd.s32 %s58, 1
      %p62 = scmp.eq.s32.totalorder %s24, 1
      %p63 = scmp.ne.s32.totalorder %s58, %s60
      %p64 = scmp.eq.s32.totalorder %s24, 0
      %p65 = por %p63, %p64
      %p66 = scmp.ne.s32.totalorder %s58, %s60
      %p67 = scmp.eq.s32.totalorder %s29, 1
      %p68 = por %p66, %p67
      %p69 = scmp.ne.s32.totalorder %s60, %s61
      %p70 = scmp.eq.s32.totalorder %s29, 0
      %p71 = por %p69, %p70
      %p72 = scmp.ne.s32.totalorder %s60, %s61
      %p73 = scmp.eq.s32.totalorder %s30, 1
      %p74 = por %p72, %p73
      %p76 = scmp.ne.s32.totalorder %s61, %s75
      %p77 = scmp.eq.s32.totalorder %s30, 0
      %p78 = por %p76, %p77
      %s80 = sadd.s32 %s79, 1
      %p83 = scmp.eq.s32.totalorder %s24, 1
      %p84 = scmp.ne.s32.totalorder %s79, %s81
      %p85 = scmp.eq.s32.totalorder %s24, 0
      %p86 = por %p84, %p85
      %p87 = scmp.ne.s32.totalorder %s79, %s81
      %p88 = scmp.eq.s32.totalorder %s29, 1
      %p89 = por %p87, %p88
      %p90 = scmp.ne.s32.totalorder %s81, %s82
      %p91 = scmp.eq.s32.totalorder %s29, 0
      %p92 = por %p90, %p91
      %p93 = scmp.ne.s32.totalorder %s81, %s82
      %p94 = scmp.eq.s32.totalorder %s30, 1
      %p95 = por %p93, %p94
      %p97 = scmp.ne.s32.totalorder %s82, %s96
      %p98 = scmp.eq.s32.totalorder %s30, 0
      %p99 = por %p97, %p98
      %s101 = sadd.s32 %s100, 1
      %p104 = scmp.eq.s32.totalorder %s24, 1
      %p105 = scmp.ne.s32.totalorder %s100, %s102
      %p106 = scmp.eq.s32.totalorder %s24, 0
      %p107 = por %p105, %p106
      %p108 = scmp.ne.s32.totalorder %s100, %s102
      %p109 = scmp.eq.s32.totalorder %s29, 1
      %p110 = por %p108, %p109
      %p111 = scmp.ne.s32.totalorder %s102, %s103
      %p112 = scmp.eq.s32.totalorder %s29, 0
      %p113 = por %p111, %p112
      %p114 = scmp.ne.s32.totalorder %s102, %s103
      %p115 = scmp.eq.s32.totalorder %s30, 1
      %p116 = por %p114, %p115
      %p118 = scmp.ne.s32.totalorder %s103, %s117
      %p119 = scmp.eq.s32.totalorder %s30, 0
      %p120 = por %p118, %p119
      %s122 = sadd.s32 %s121, 1
      %p125 = scmp.eq.s32.totalorder %s24, 1
      %p126 = scmp.ne.s32.totalorder %s121, %s123
      %p127 = scmp.eq.s32.totalorder %s24, 0
      %p128 = por %p126, %p127
      %p129 = scmp.ne.s32.totalorder %s121, %s123
      %p130 = scmp.eq.s32.totalorder %s29, 1
      %p131 = por %p129, %p130
      %p132 = scmp.ne.s32.totalorder %s123, %s124
      %p133 = scmp.eq.s32.totalorder %s29, 0
      %p134 = por %p132, %p133
      %p135 = scmp.ne.s32.totalorder %s123, %s124
      %p136 = scmp.eq.s32.totalorder %s30, 1
      %p137 = por %p135, %p136
      %p139 = scmp.ne.s32.totalorder %s124, %s138
      %p140 = scmp.eq.s32.totalorder %s30, 0
      %p141 = por %p139, %p140
      %s143 = sadd.s32 %s142, 1
      %p146 = scmp.eq.s32.totalorder %s24, 1
      %p147 = scmp.ne.s32.totalorder %s142, %s144
      %p148 = scmp.eq.s32.totalorder %s24, 0
      %p149 = por %p147, %p148
      %p150 = scmp.ne.s32.totalorder %s142, %s144
      %p151 = scmp.eq.s32.totalorder %s29, 1
      %p152 = por %p150, %p151
      %p153 = scmp.ne.s32.totalorder %s144, %s145
      %p154 = scmp.eq.s32.totalorder %s29, 0
      %p155 = por %p153, %p154
      %p156 = scmp.ne.s32.totalorder %s144, %s145
      %p157 = scmp.eq.s32.totalorder %s30, 1
      %p158 = por %p156, %p157
      %p160 = scmp.ne.s32.totalorder %s145, %s159
      %p161 = scmp.eq.s32.totalorder %s30, 0
      %p162 = por %p160, %p161
      %s164 = sadd.s32 %s163, 1
      %p167 = scmp.eq.s32.totalorder %s24, 1
      %p168 = scmp.ne.s32.totalorder %s163, %s165
      %p169 = scmp.eq.s32.totalorder %s24, 0
      %p170 = por %p168, %p169
      %p171 = scmp.ne.s32.totalorder %s163, %s165
      %p172 = scmp.eq.s32.totalorder %s29, 1
      %p173 = por %p171, %p172
      %p174 = scmp.ne.s32.totalorder %s165, %s166
      %p175 = scmp.eq.s32.totalorder %s29, 0
      %p176 = por %p174, %p175
      %p177 = scmp.ne.s32.totalorder %s165, %s166
      %p178 = scmp.eq.s32.totalorder %s30, 1
      %p179 = por %p177, %p178
      %p181 = scmp.ne.s32.totalorder %s166, %s180
      %p182 = scmp.eq.s32.totalorder %s30, 0
      %p183 = por %p181, %p182
      %s185 = sadd.s32 %s184, 1
      %p188 = scmp.eq.s32.totalorder %s24, 1
      %p189 = scmp.ne.s32.totalorder %s184, %s186
      %p190 = scmp.eq.s32.totalorder %s24, 0
      %p191 = por %p189, %p190
      %p192 = scmp.ne.s32.totalorder %s184, %s186
      %p193 = scmp.eq.s32.totalorder %s29, 1
      %p194 = por %p192, %p193
      %p195 = scmp.ne.s32.totalorder %s186, %s187
      %p196 = scmp.eq.s32.totalorder %s29, 0
      %p197 = por %p195, %p196
      %p198 = scmp.ne.s32.totalorder %s186, %s187
      %p199 = scmp.eq.s32.totalorder %s30, 1
      %p200 = por %p198, %p199
      %p202 = scmp.ne.s32.totalorder %s187, %s201
      %p203 = scmp.eq.s32.totalorder %s30, 0
      %p204 = por %p202, %p203
      %s206 = sadd.s32 %s205, 1
      %p209 = scmp.eq.s32.totalorder %s24, 1
      %p210 = scmp.ne.s32.totalorder %s205, %s207
      %p211 = scmp.eq.s32.totalorder %s24, 0
      %p212 = por %p210, %p211
      %p213 = scmp.ne.s32.totalorder %s205, %s207
      %p214 = scmp.eq.s32.totalorder %s29, 1
      %p215 = por %p213, %p214
      %p216 = scmp.ne.s32.totalorder %s207, %s208
      %p217 = scmp.eq.s32.totalorder %s29, 0
      %p218 = por %p216, %p217
      %p219 = scmp.ne.s32.totalorder %s207, %s208
      %p220 = scmp.eq.s32.totalorder %s30, 1
      %p221 = por %p219, %p220
      %p223 = scmp.ne.s32.totalorder %s208, %s222
      %p224 = scmp.eq.s32.totalorder %s30, 0
      %p225 = por %p223, %p224
      %s227 = sadd.s32 %s226, 1
      %p230 = scmp.eq.s32.totalorder %s24, 1
      %p231 = scmp.ne.s32.totalorder %s226, %s228
      %p232 = scmp.eq.s32.totalorder %s24, 0
      %p233 = por %p231, %p232
      %p234 = scmp.ne.s32.totalorder %s226, %s228
      %p235 = scmp.eq.s32.totalorder %s29, 1
      %p236 = por %p234, %p235
      %p237 = scmp.ne.s32.totalorder %s228, %s229
      %p238 = scmp.eq.s32.totalorder %s29, 0
      %p239 = por %p237, %p238
      %p240 = scmp.ne.s32.totalorder %s228, %s229
      %p241 = scmp.eq.s32.totalorder %s30, 1
      %p242 = por %p240, %p241
      %p244 = scmp.ne.s32.totalorder %s229, %s243
      %p245 = scmp.eq.s32.totalorder %s30, 0
      %p246 = por %p244, %p245
      %s247 = ssub.s32 %s24, %s31
      %p248 = scmp.eq.s32.totalorder %s247, 0
      %s250 = sadd.s32 %s249, 1
      %s251 = scalar_select %p248, %s249, %s250
      %p254 = pneg %p248
      %p255 = scmp.eq.s32.totalorder %s24, 1
      %p256 = por %p254, %p255
      %p257 = scmp.ne.s32.totalorder %s249, %s252
      %p258 = scmp.eq.s32.totalorder %s24, 0
      %p259 = por %p257, %p258
      %p260 = scmp.ne.s32.totalorder %s249, %s252
      %p261 = scmp.eq.s32.totalorder %s29, 1
      %p262 = por %p260, %p261
      %p263 = scmp.ne.s32.totalorder %s252, %s253
      %p264 = scmp.eq.s32.totalorder %s29, 0
      %p265 = por %p263, %p264
      %p266 = scmp.ne.s32.totalorder %s252, %s253
      %p267 = scmp.eq.s32.totalorder %s30, 1
      %p268 = por %p266, %p267
      %p270 = scmp.ne.s32.totalorder %s253, %s269
      %p271 = scmp.eq.s32.totalorder %s30, 0
      %p272 = por %p270, %p271
      %p273 = scmp.le.s32.totalorder 1, %s24
      %p274 = scmp.lt.s32.totalorder %s24, 3
      %p275 = pnand %p273, %p274
      %p276 = pneg %p275
      // Predicated region
      $region9: #{tpu_custom_call.1} parent=5 // pred_check
        _
      $region10: #{tpu_custom_call.1} parent=5 // pred_check_branch
        %278 = sbr.rel (%p275) target = $region12
      $region11: #{tpu_custom_call.1} parent=5 // pred_region
        %s279 = ssub.s32 %s24, 1
        // Predicated region
        $region13: #{tpu_custom_call.1} parent=11 // pred_check
          %p280 = pneg %p71
        $region14: #{tpu_custom_call.1} parent=11 // pred_check_branch
          %282 = sbr.rel (%p280) target = $region16
        $region15: #{tpu_custom_call.1} parent=11 // pred_region
          %s284 = ssub.s32 10240, 10240
          %285 = vsyncadd [#allocation7], %s284
          %s286 = sshll.u32 [#allocation6], 4
          %s287 = int_to_ptr.vmem [resolvable:$true] %s286
          %292 = dma.hbm_to_vmem [thread:$0]  %s1, 10240, %s287, [#allocation7], 128, 128, 8
        $region16: #{tpu_custom_call.1} parent=11 // pred_fallthru
          _
        // Predicated region
        $region17: #{tpu_custom_call.1} parent=11 // pred_check
          %p293 = pneg %p92
        $region18: #{tpu_custom_call.1} parent=11 // pred_check_branch
          %295 = sbr.rel (%p293) target = $region20
        $region19: #{tpu_custom_call.1} parent=11 // pred_region
          _
        $region20: #{tpu_custom_call.1} parent=11 // pred_fallthru
          _
        // Predicated region
        $region21: #{tpu_custom_call.1} parent=11 // pred_check
          %p296 = pneg %p113
        $region22: #{tpu_custom_call.1} parent=11 // pred_check_branch
          %298 = sbr.rel (%p296) target = $region24
        $region23: #{tpu_custom_call.1} parent=11 // pred_region
          _
        $region24: #{tpu_custom_call.1} parent=11 // pred_fallthru
          _
        // Predicated region
        $region25: #{tpu_custom_call.1} parent=11 // pred_check
          %p299 = pneg %p134
        $region26: #{tpu_custom_call.1} parent=11 // pred_check_branch
          %301 = sbr.rel (%p299) target = $region28
        $region27: #{tpu_custom_call.1} parent=11 // pred_region
          _
        $region28: #{tpu_custom_call.1} parent=11 // pred_fallthru
          _
        // Predicated region
        $region29: #{tpu_custom_call.1} parent=11 // pred_check
          %p302 = pneg %p155
        $region30: #{tpu_custom_call.1} parent=11 // pred_check_branch
          %304 = sbr.rel (%p302) target = $region32
        $region31: #{tpu_custom_call.1} parent=11 // pred_region
          %s306 = ssub.s32 10240, 10240
          %307 = vsyncadd [#allocation7], %s306
          %s308 = sshll.u32 [#allocation8], 4
          %s309 = int_to_ptr.vmem [resolvable:$true] %s308
          %314 = dma.hbm_to_vmem [thread:$0]  %s5, 10240, %s309, [#allocation7], 128, 128, 8
        $region32: #{tpu_custom_call.1} parent=11 // pred_fallthru
          _
        // Predicated region
        $region33: #{tpu_custom_call.1} parent=11 // pred_check
          %p315 = pneg %p176
        $region34: #{tpu_custom_call.1} parent=11 // pred_check_branch
          %317 = sbr.rel (%p315) target = $region36
        $region35: #{tpu_custom_call.1} parent=11 // pred_region
          _
        $region36: #{tpu_custom_call.1} parent=11 // pred_fallthru
          _
        // Predicated region
        $region37: #{tpu_custom_call.1} parent=11 // pred_check
          %p318 = pneg %p197
        $region38: #{tpu_custom_call.1} parent=11 // pred_check_branch
          %320 = sbr.rel (%p318) target = $region40
        $region39: #{tpu_custom_call.1} parent=11 // pred_region
          _
        $region40: #{tpu_custom_call.1} parent=11 // pred_fallthru
          _
        // Predicated region
        $region41: #{tpu_custom_call.1} parent=11 // pred_check
          %p321 = pneg %p218
        $region42: #{tpu_custom_call.1} parent=11 // pred_check_branch
          %323 = sbr.rel (%p321) target = $region44
        $region43: #{tpu_custom_call.1} parent=11 // pred_region
          _
        $region44: #{tpu_custom_call.1} parent=11 // pred_fallthru
          _
        // Predicated region
        $region45: #{tpu_custom_call.1} parent=11 // pred_check
          %p324 = pneg %p239
        $region46: #{tpu_custom_call.1} parent=11 // pred_check_branch
          %326 = sbr.rel (%p324) target = $region48
        $region47: #{tpu_custom_call.1} parent=11 // pred_region
          %s328 = ssub.s32 2048, 2048
          %329 = vsyncadd [#allocation10], %s328
          %s330 = sshll.u32 [#allocation9], 4
          %s331 = int_to_ptr.vmem [resolvable:$true] %s330
          %336 = dma.hbm_to_vmem [thread:$0]  %s9, 2048, %s331, [#allocation10], 128, 128, 8
        $region48: #{tpu_custom_call.1} parent=11 // pred_fallthru
          _
      $region12: #{tpu_custom_call.1} parent=5 // pred_fallthru
        _
      %p337 = scmp.lt.s32.totalorder %s24, 2
      // Predicated region
      $region49: #{tpu_custom_call.1} parent=5 // pred_check
        %p338 = pneg %p337
      $region50: #{tpu_custom_call.1} parent=5 // pred_check_branch
        %340 = sbr.rel (%p338) target = $region52
      $region51: #{tpu_custom_call.1} parent=5 // pred_region
        // Predicated region
        $region53: #{tpu_custom_call.1} parent=51 // pred_check
          %p341 = pneg %p44
        $region54: #{tpu_custom_call.1} parent=51 // pred_check_branch
          %343 = sbr.rel (%p341) target = $region56
        $region55: #{tpu_custom_call.1} parent=51 // pred_region
          %s344 = sand.u32 %s34, 1
          %s345 = scalar_lea.sflag [#allocation4], %s344
          %s346 = sand.u32 %s34, 1
          %s347 = smul.addr %s346, 16
          %s348 = scalar_lea.vmem [#allocation3], %s347
          %s350 = ssub.s32 256, 256
          %351 = vsyncadd %s345, %s350
          %s352 = smul.addr %s24, 2
          %s353 = smul.addr %s352, 128
          %s354 = scalar_lea.hbm %s0, %s353
          %s355 = sshll.u32 %s348, 4
          %s356 = int_to_ptr.vmem [resolvable:$true] %s355
          %361 = dma.hbm_to_vmem [thread:$0]  %s354, 256, %s356, %s345, 128, 128, 8
        $region56: #{tpu_custom_call.1} parent=51 // pred_fallthru
          _
      $region52: #{tpu_custom_call.1} parent=5 // pred_fallthru
        _
      %p362 = scmp.le.s32.totalorder 1, %s24
      %p363 = scmp.lt.s32.totalorder %s24, 3
      %p364 = pnand %p362, %p363
      %p365 = pneg %p364
      // Predicated region
      $region57: #{tpu_custom_call.1} parent=5 // pred_check
        _
      $region58: #{tpu_custom_call.1} parent=5 // pred_check_branch
        %367 = sbr.rel (%p364) target = $region60
      $region59: #{tpu_custom_call.1} parent=5 // pred_region
        %s368 = ssub.s32 %s24, 1
        %s369 = sand.u32 %s37, 1
        %s370 = scalar_lea.sflag [#allocation4], %s369
        %s371 = sand.u32 %s37, 1
        %s372 = smul.addr %s371, 16
        %s373 = scalar_lea.vmem [#allocation3], %s372
        // Predicated region
        $region61: #{tpu_custom_call.1} parent=59 // pred_check
          %p374 = pneg %p50
        $region62: #{tpu_custom_call.1} parent=59 // pred_check_branch
          %376 = sbr.rel (%p374) target = $region64
        $region63: #{tpu_custom_call.1} parent=59 // pred_region
          %377 = dma.done %s370, 256
        $region64: #{tpu_custom_call.1} parent=59 // pred_fallthru
          _
        // Predicated region
        $region65: #{tpu_custom_call.1} parent=59 // pred_check
          %p378 = pneg %p71
        $region66: #{tpu_custom_call.1} parent=59 // pred_check_branch
          %380 = sbr.rel (%p378) target = $region68
        $region67: #{tpu_custom_call.1} parent=59 // pred_region
          %381 = dma.done [#allocation7], 10240
        $region68: #{tpu_custom_call.1} parent=59 // pred_fallthru
          _
        // Predicated region
        $region69: #{tpu_custom_call.1} parent=59 // pred_check
          %p382 = pneg %p155
        $region70: #{tpu_custom_call.1} parent=59 // pred_check_branch
          %384 = sbr.rel (%p382) target = $region72
        $region71: #{tpu_custom_call.1} parent=59 // pred_region
          %385 = dma.done [#allocation7], 10240
        $region72: #{tpu_custom_call.1} parent=59 // pred_fallthru
          _
        // Predicated region
        $region73: #{tpu_custom_call.1} parent=59 // pred_check
          %p386 = pneg %p239
        $region74: #{tpu_custom_call.1} parent=59 // pred_check_branch
          %388 = sbr.rel (%p386) target = $region76
        $region75: #{tpu_custom_call.1} parent=59 // pred_region
          %389 = dma.done [#allocation10], 2048
        $region76: #{tpu_custom_call.1} parent=59 // pred_fallthru
          _
        %s390 = sand.u32 %s37, 1
        %s391 = scalar_lea.sflag [#allocation4], %s390
        %s392 = sand.u32 %s37, 1
        %s393 = smul.addr %s392, 16
        %s394 = scalar_lea.vmem [#allocation3], %s393
        %p395 = pneg %p50
        %p396 = pneg %p47
        %p397 = pneg %p71
        %p398 = pneg %p68
        %p399 = pneg %p92
        %p400 = pneg %p89
        %p401 = pneg %p113
        %p402 = pneg %p110
        %p403 = pneg %p134
        %p404 = pneg %p131
        %p405 = pneg %p155
        %p406 = pneg %p152
        %p407 = pneg %p176
        %p408 = pneg %p173
        %p409 = pneg %p197
        %p410 = pneg %p194
        %p411 = pneg %p218
        %p412 = pneg %p215
        %p413 = pneg %p239
        %p414 = pneg %p236
        %p415 = pneg %p265
        %p416 = pneg %p262
        %s417 = sand.u32 %s252, 1
        %s418 = scalar_lea.sflag [#allocation5], %s417
        %s419 = sand.u32 %s252, 1
        %s420 = smul.addr %s419, 16
        %s421 = scalar_lea.vmem [#allocation11], %s420
        %422 = vst [vmem:[#allocation2] sm:$0x3] 0.0
        %423 = vst [vmem:[#allocation2 + $0x12] sm:$0x3] 0.0
        %v424 = vld [vmem:[%s373] sm:$0xff]
        %v425 = vld [vmem:[%s373 + $0x8] sm:$0xff]
        %v426 = vld [vmem:[%s2] sm:$0x1]
        %427 = vst [vmem:[#allocation2 + $0x2] sm:$0xff] %v424
        %428 = vst [vmem:[#allocation2 + $0xa] sm:$0xff] %v425
        %v429 = vld [vmem:[#allocation2] sm:$0xff]
        %v430 = vld [vmem:[#allocation2 + $0x8] sm:$0xff]
        %v431 = vld [vmem:[#allocation2 + $0x1] sm:$0xff]
        %v432 = vld [vmem:[#allocation2 + $0x9] sm:$0xff]
        %v433 = vld [vmem:[#allocation2 + $0x2] sm:$0xff]
        %v434 = vld [vmem:[#allocation2 + $0xa] sm:$0xff]
        %v435 = vld [vmem:[#allocation2 + $0x3] sm:$0xff]
        %v436 = vld [vmem:[#allocation2 + $0xb] sm:$0xff]
        %v437 = vld [vmem:[#allocation2 + $0x4] sm:$0xff]
        %v438 = vld [vmem:[#allocation2 + $0xc] sm:$0xff]
        %v439 = vld [vmem:[#allocation6] sm:$0xff]
        %v440 = vld [vmem:[#allocation6 + $0x8] sm:$0xff]
        %v441 = vld [vmem:[#allocation6 + $0x10] sm:$0xff]
        %v442 = vld [vmem:[#allocation6 + $0x18] sm:$0xff]
        %v443 = vld [vmem:[#allocation6 + $0x20] sm:$0xff]
        %v444 = vld [vmem:[#allocation6 + $0x28] sm:$0xff]
        %v445 = vld [vmem:[#allocation6 + $0x30] sm:$0xff]
        %v446 = vld [vmem:[#allocation6 + $0x38] sm:$0xff]
        %v447 = vld [vmem:[#allocation6 + $0x40] sm:$0xff]
        %v448 = vld [vmem:[#allocation6 + $0x48] sm:$0xff]
        %v449 = vld [vmem:[#allocation6 + $0x50] sm:$0xff]
        %v450 = vld [vmem:[#allocation6 + $0x58] sm:$0xff]
        %v451 = vld [vmem:[#allocation6 + $0x60] sm:$0xff]
        %v452 = vld [vmem:[#allocation6 + $0x68] sm:$0xff]
        %v453 = vld [vmem:[#allocation6 + $0x70] sm:$0xff]
        %v454 = vld [vmem:[#allocation6 + $0x78] sm:$0xff]
        %v455 = vld [vmem:[#allocation6 + $0x80] sm:$0xff]
        %v456 = vld [vmem:[#allocation6 + $0x88] sm:$0xff]
        %v457 = vld [vmem:[#allocation6 + $0x90] sm:$0xff]
        %v458 = vld [vmem:[#allocation6 + $0x98] sm:$0xff]
        %v459 = vld [vmem:[#allocation6 + $0xa0] sm:$0xff]
        %v460 = vld [vmem:[#allocation6 + $0xa8] sm:$0xff]
        %v461 = vld [vmem:[#allocation6 + $0xb0] sm:$0xff]
        %v462 = vld [vmem:[#allocation6 + $0xb8] sm:$0xff]
        %v463 = vld [vmem:[#allocation6 + $0xc0] sm:$0xff]
        %v464 = vld [vmem:[#allocation6 + $0xc8] sm:$0xff]
        %v465 = vld [vmem:[#allocation6 + $0xd0] sm:$0xff]
        %v466 = vld [vmem:[#allocation6 + $0xd8] sm:$0xff]
        %v467 = vld [vmem:[#allocation6 + $0xe0] sm:$0xff]
        %v468 = vld [vmem:[#allocation6 + $0xe8] sm:$0xff]
        %v469 = vld [vmem:[#allocation6 + $0xf0] sm:$0xff]
        %v470 = vld [vmem:[#allocation6 + $0xf8] sm:$0xff]
        %v471 = vld [vmem:[#allocation6 + $0x100] sm:$0xff]
        %v472 = vld [vmem:[#allocation6 + $0x108] sm:$0xff]
        %v473 = vld [vmem:[#allocation6 + $0x110] sm:$0xff]
        %v474 = vld [vmem:[#allocation6 + $0x118] sm:$0xff]
        %v475 = vld [vmem:[#allocation6 + $0x120] sm:$0xff]
        %v476 = vld [vmem:[#allocation6 + $0x128] sm:$0xff]
        %v477 = vld [vmem:[#allocation6 + $0x130] sm:$0xff]
        %v478 = vld [vmem:[#allocation6 + $0x138] sm:$0xff]
        %v479 = vld [vmem:[#allocation6 + $0x140] sm:$0xff]
        %v480 = vld [vmem:[#allocation6 + $0x148] sm:$0xff]
        %v481 = vld [vmem:[#allocation6 + $0x150] sm:$0xff]
        %v482 = vld [vmem:[#allocation6 + $0x158] sm:$0xff]
        %v483 = vld [vmem:[#allocation6 + $0x160] sm:$0xff]
        %v484 = vld [vmem:[#allocation6 + $0x168] sm:$0xff]
        %v485 = vld [vmem:[#allocation6 + $0x170] sm:$0xff]
        %v486 = vld [vmem:[#allocation6 + $0x178] sm:$0xff]
        %v487 = vld [vmem:[#allocation6 + $0x180] sm:$0xff]
        %v488 = vld [vmem:[#allocation6 + $0x188] sm:$0xff]
        %v489 = vld [vmem:[#allocation6 + $0x190] sm:$0xff]
        %v490 = vld [vmem:[#allocation6 + $0x198] sm:$0xff]
        %v491 = vld [vmem:[#allocation6 + $0x1a0] sm:$0xff]
        %v492 = vld [vmem:[#allocation6 + $0x1a8] sm:$0xff]
        %v493 = vld [vmem:[#allocation6 + $0x1b0] sm:$0xff]
        %v494 = vld [vmem:[#allocation6 + $0x1b8] sm:$0xff]
        %v495 = vld [vmem:[#allocation6 + $0x1c0] sm:$0xff]
        %v496 = vld [vmem:[#allocation6 + $0x1c8] sm:$0xff]
        %v497 = vld [vmem:[#allocation6 + $0x1d0] sm:$0xff]
        %v498 = vld [vmem:[#allocation6 + $0x1d8] sm:$0xff]
        %v499 = vld [vmem:[#allocation6 + $0x1e0] sm:$0xff]
        %v500 = vld [vmem:[#allocation6 + $0x1e8] sm:$0xff]
        %v501 = vld [vmem:[#allocation6 + $0x1f0] sm:$0xff]
        %v502 = vld [vmem:[#allocation6 + $0x1f8] sm:$0xff]
        %v503 = vld [vmem:[#allocation6 + $0x200] sm:$0xff]
        %v504 = vld [vmem:[#allocation6 + $0x208] sm:$0xff]
        %v505 = vld [vmem:[#allocation6 + $0x210] sm:$0xff]
        %v506 = vld [vmem:[#allocation6 + $0x218] sm:$0xff]
        %v507 = vld [vmem:[#allocation6 + $0x220] sm:$0xff]
        %v508 = vld [vmem:[#allocation6 + $0x228] sm:$0xff]
        %v509 = vld [vmem:[#allocation6 + $0x230] sm:$0xff]
        %v510 = vld [vmem:[#allocation6 + $0x238] sm:$0xff]
        %v511 = vld [vmem:[#allocation6 + $0x240] sm:$0xff]
        %v512 = vld [vmem:[#allocation6 + $0x248] sm:$0xff]
        %v513 = vld [vmem:[#allocation6 + $0x250] sm:$0xff]
        %v514 = vld [vmem:[#allocation6 + $0x258] sm:$0xff]
        %v515 = vld [vmem:[#allocation6 + $0x260] sm:$0xff]
        %v516 = vld [vmem:[#allocation6 + $0x268] sm:$0xff]
        %v517 = vld [vmem:[#allocation6 + $0x270] sm:$0xff]
        %v518 = vld [vmem:[#allocation6 + $0x278] sm:$0xff]
        %v520 = vlaneseq
        %v521 = vshrl.u32 %v520, 7
        %v522 = vsub.s32 0, %v521
        %v523 = vrot.slane %v426, %v522
        %525 = vmatprep.subr.mxu0 0.0
        %526 = vmatpush1.msra.mxu0 %v439
        %527 = vmatprep.subr.mxu0 0.0
        %528 = vmatpush1.msra.mxu0 %v440
        %529 = vmatprep.subr.mxu0 0.0
        %530 = vmatpush1.msra.mxu0 %v441
        %531 = vmatprep.subr.mxu0 0.0
        %532 = vmatpush1.msra.mxu0 %v442
        %533 = vmatprep.subr.mxu0 0.0
        %534 = vmatpush1.msra.mxu0 %v443
        %535 = vmatprep.subr.mxu0 0.0
        %536 = vmatpush1.msra.mxu0 %v444
        %537 = vmatprep.subr.mxu0 0.0
        %538 = vmatpush1.msra.mxu0 %v445
        %539 = vmatprep.subr.mxu0 0.0
        %540 = vmatpush1.msra.mxu0 %v446
        %541 = vmatprep.subr.mxu0 0.0
        %542 = vmatpush1.msra.mxu0 %v447
        %543 = vmatprep.subr.mxu0 0.0
        %544 = vmatpush1.msra.mxu0 %v448
        %545 = vmatprep.subr.mxu0 0.0
        %546 = vmatpush1.msra.mxu0 %v449
        %547 = vmatprep.subr.mxu0 0.0
        %548 = vmatpush1.msra.mxu0 %v450
        %549 = vmatprep.subr.mxu0 0.0
        %550 = vmatpush1.msra.mxu0 %v451
        %551 = vmatprep.subr.mxu0 0.0
        %552 = vmatpush1.msra.mxu0 %v452
        %553 = vmatprep.subr.mxu0 0.0
        %554 = vmatpush1.msra.mxu0 %v453
        %555 = vmatprep.subr.mxu0 0.0
        %556 = vmatpush1.msra.mxu0 %v454
        %557 = vmatprep.subr.mxu0 0.0
        %558 = vmatpush1.msra.mxu0 %v455
        %559 = vmatprep.subr.mxu0 0.0
        %560 = vmatpush1.msra.mxu0 %v456
        %561 = vmatprep.subr.mxu0 0.0
        %562 = vmatpush1.msra.mxu0 %v457
        %563 = vmatprep.subr.mxu0 0.0
        %564 = vmatpush1.msra.mxu0 %v458
        %565 = vmatprep.subr.mxu0 0.0
        %566 = vmatpush1.msra.mxu0 %v459
        %567 = vmatprep.subr.mxu0 0.0
        %568 = vmatpush1.msra.mxu0 %v460
        %569 = vmatprep.subr.mxu0 0.0
        %570 = vmatpush1.msra.mxu0 %v461
        %571 = vmatprep.subr.mxu0 0.0
        %572 = vmatpush1.msra.mxu0 %v462
        %573 = vmatprep.subr.mxu0 0.0
        %574 = vmatpush1.msra.mxu0 %v463
        %575 = vmatprep.subr.mxu0 0.0
        %576 = vmatpush1.msra.mxu0 %v464
        %577 = vmatprep.subr.mxu0 0.0
        %578 = vmatpush1.msra.mxu0 %v465
        %579 = vmatprep.subr.mxu0 0.0
        %580 = vmatpush1.msra.mxu0 %v466
        %581 = vmatprep.subr.mxu0 0.0
        %582 = vmatpush1.msra.mxu0 %v467
        %583 = vmatprep.subr.mxu0 0.0
        %584 = vmatpush1.msra.mxu0 %v468
        %585 = vmatprep.subr.mxu0 0.0
        %586 = vmatpush1.msra.mxu0 %v469
        %587 = vmatprep.subr.mxu0 0.0
        %588 = vmatpush1.msra.mxu0 %v470
        %589 = vmatprep.mubr.f32.mxu0 %v431
        %590 = vmatmul.mubr.f32.gmra.mrb[0].mxu0 %v429
        %v591 = vpop.f32.mrb[0].mxu0
        %v592 = vadd.f32 %v523, %v591
        %v593 = vpop.f32.mrb[0].mxu0
        %594 = vmatprep.mubr.f32.mxu0 %v432
        %595 = vmatmul.mubr.f32.gmra.mrb[0].mxu0 %v430
        %v596 = vpop.f32.mrb[0].mxu0
        %v597 = vadd.f32 %v523, %v596
        %v598 = vpop.f32.mrb[0].mxu0
        %599 = vdwg.mxu0
        %600 = vmatprep.subr.mxu0 0.0
        %601 = vmatpush1.msra.mxu0 %v471
        %602 = vmatprep.subr.mxu0 0.0
        %603 = vmatpush1.msra.mxu0 %v472
        %604 = vmatprep.subr.mxu0 0.0
        %605 = vmatpush1.msra.mxu0 %v473
        %606 = vmatprep.subr.mxu0 0.0
        %607 = vmatpush1.msra.mxu0 %v474
        %608 = vmatprep.subr.mxu0 0.0
        %609 = vmatpush1.msra.mxu0 %v475
        %610 = vmatprep.subr.mxu0 0.0
        %611 = vmatpush1.msra.mxu0 %v476
        %612 = vmatprep.subr.mxu0 0.0
        %613 = vmatpush1.msra.mxu0 %v477
        %614 = vmatprep.subr.mxu0 0.0
        %615 = vmatpush1.msra.mxu0 %v478
        %616 = vmatprep.subr.mxu0 0.0
        %617 = vmatpush1.msra.mxu0 %v479
        %618 = vmatprep.subr.mxu0 0.0
        %619 = vmatpush1.msra.mxu0 %v480
        %620 = vmatprep.subr.mxu0 0.0
        %621 = vmatpush1.msra.mxu0 %v481
        %622 = vmatprep.subr.mxu0 0.0
        %623 = vmatpush1.msra.mxu0 %v482
        %624 = vmatprep.subr.mxu0 0.0
        %625 = vmatpush1.msra.mxu0 %v483
        %626 = vmatprep.subr.mxu0 0.0
        %627 = vmatpush1.msra.mxu0 %v484
        %628 = vmatprep.subr.mxu0 0.0
        %629 = vmatpush1.msra.mxu0 %v485
        %630 = vmatprep.subr.mxu0 0.0
        %631 = vmatpush1.msra.mxu0 %v486
        %632 = vmatprep.subr.mxu0 0.0
        %633 = vmatpush1.msra.mxu0 %v487
        %634 = vmatprep.subr.mxu0 0.0
        %635 = vmatpush1.msra.mxu0 %v488
        %636 = vmatprep.subr.mxu0 0.0
        %637 = vmatpush1.msra.mxu0 %v489
        %638 = vmatprep.subr.mxu0 0.0
        %639 = vmatpush1.msra.mxu0 %v490
        %640 = vmatprep.subr.mxu0 0.0
        %641 = vmatpush1.msra.mxu0 %v491
        %642 = vmatprep.subr.mxu0 0.0
        %643 = vmatpush1.msra.mxu0 %v492
        %644 = vmatprep.subr.mxu0 0.0
        %645 = vmatpush1.msra.mxu0 %v493
        %646 = vmatprep.subr.mxu0 0.0
        %647 = vmatpush1.msra.mxu0 %v494
        %648 = vmatprep.subr.mxu0 0.0
        %649 = vmatpush1.msra.mxu0 %v495
        %650 = vmatprep.subr.mxu0 0.0
        %651 = vmatpush1.msra.mxu0 %v496
        %652 = vmatprep.subr.mxu0 0.0
        %653 = vmatpush1.msra.mxu0 %v497
        %654 = vmatprep.subr.mxu0 0.0
        %655 = vmatpush1.msra.mxu0 %v498
        %656 = vmatprep.subr.mxu0 0.0
        %657 = vmatpush1.msra.mxu0 %v499
        %658 = vmatprep.subr.mxu0 0.0
        %659 = vmatpush1.msra.mxu0 %v500
        %660 = vmatprep.subr.mxu0 0.0
        %661 = vmatpush1.msra.mxu0 %v501
        %662 = vmatprep.subr.mxu0 0.0
        %663 = vmatpush1.msra.mxu0 %v502
        %664 = vmatprep.mubr.f32.mxu0 %v435
        %665 = vmatmul.mubr.f32.gmra.mrb[0].mxu0 %v433
        %v666 = vpop.f32.mrb[0].mxu0
        %v667 = vadd.f32 %v592, %v666
        %v668 = vpop.f32.mrb[0].mxu0
        %669 = vmatprep.mubr.f32.mxu0 %v436
        %670 = vmatmul.mubr.f32.gmra.mrb[0].mxu0 %v434
        %v671 = vpop.f32.mrb[0].mxu0
        %v672 = vadd.f32 %v597, %v671
        %v673 = vpop.f32.mrb[0].mxu0
        %674 = vdwg.mxu0
        %675 = vmatprep.subr.mxu0 0.0
        %676 = vmatpush1.msra.mxu0 %v503
        %677 = vmatprep.subr.mxu0 0.0
        %678 = vmatpush1.msra.mxu0 %v504
        %679 = vmatprep.subr.mxu0 0.0
        %680 = vmatpush1.msra.mxu0 %v505
        %681 = vmatprep.subr.mxu0 0.0
        %682 = vmatpush1.msra.mxu0 %v506
        %683 = vmatprep.subr.mxu0 0.0
        %684 = vmatpush1.msra.mxu0 %v507
        %685 = vmatprep.subr.mxu0 0.0
        %686 = vmatpush1.msra.mxu0 %v508
        %687 = vmatprep.subr.mxu0 0.0
        %688 = vmatpush1.msra.mxu0 %v509
        %689 = vmatprep.subr.mxu0 0.0
        %690 = vmatpush1.msra.mxu0 %v510
        %691 = vmatprep.subr.mxu0 0.0
        %692 = vmatpush1.msra.mxu0 %v511
        %693 = vmatprep.subr.mxu0 0.0
        %694 = vmatpush1.msra.mxu0 %v512
        %695 = vmatprep.subr.mxu0 0.0
        %696 = vmatpush1.msra.mxu0 %v513
        %697 = vmatprep.subr.mxu0 0.0
        %698 = vmatpush1.msra.mxu0 %v514
        %699 = vmatprep.subr.mxu0 0.0
        %700 = vmatpush1.msra.mxu0 %v515
        %701 = vmatprep.subr.mxu0 0.0
        %702 = vmatpush1.msra.mxu0 %v516
        %703 = vmatprep.subr.mxu0 0.0
        %704 = vmatpush1.msra.mxu0 %v517
        %705 = vmatprep.subr.mxu0 0.0
        %706 = vmatpush1.msra.mxu0 %v518
        %707 = vmatprep.subr.mxu0 0.0
        %708 = vmatpush1.msra.mxu0 0.0
        %709 = vmatprep.subr.mxu0 0.0
        %710 = vmatpush1.msra.mxu0 0.0
        %711 = vmatprep.subr.mxu0 0.0
        %712 = vmatpush1.msra.mxu0 0.0
        %713 = vmatprep.subr.mxu0 0.0
        %714 = vmatpush1.msra.mxu0 0.0
        %715 = vmatprep.subr.mxu0 0.0
        %716 = vmatpush1.msra.mxu0 0.0
        %717 = vmatprep.subr.mxu0 0.0
        %718 = vmatpush1.msra.mxu0 0.0
        %719 = vmatprep.subr.mxu0 0.0
        %720 = vmatpush1.msra.mxu0 0.0
        %721 = vmatprep.subr.mxu0 0.0
        %722 = vmatpush1.msra.mxu0 0.0
        %723 = vmatprep.subr.mxu0 0.0
        %724 = vmatpush1.msra.mxu0 0.0
        %725 = vmatprep.subr.mxu0 0.0
        %726 = vmatpush1.msra.mxu0 0.0
        %727 = vmatprep.subr.mxu0 0.0
        %728 = vmatpush1.msra.mxu0 0.0
        %729 = vmatprep.subr.mxu0 0.0
        %730 = vmatpush1.msra.mxu0 0.0
        %731 = vmatprep.subr.mxu0 0.0
        %732 = vmatpush1.msra.mxu0 0.0
        %733 = vmatprep.subr.mxu0 0.0
        %734 = vmatpush1.msra.mxu0 0.0
        %735 = vmatprep.subr.mxu0 0.0
        %736 = vmatpush1.msra.mxu0 0.0
        %737 = vmatprep.subr.mxu0 0.0
        %738 = vmatpush1.msra.mxu0 0.0
        %739 = vmatprep.mubr.f32.mxu0 0.0
        %740 = vmatmul.mubr.f32.gmra.mrb[0].mxu0 %v437
        %v741 = vpop.f32.mrb[0].mxu0
        %v742 = vadd.f32 %v667, %v741
        %v743 = vpop.f32.mrb[0].mxu0
        %744 = vmatprep.mubr.f32.mxu0 0.0
        %745 = vmatmul.mubr.f32.gmra.mrb[0].mxu0 %v438
        %v746 = vpop.f32.mrb[0].mxu0
        %v747 = vadd.f32 %v672, %v746
        %v748 = vpop.f32.mrb[0].mxu0
        %749 = vdwg.mxu0
        %v750 = vld [vmem:[%s3] sm:$0x1]
        %v751 = vld [vmem:[%s4] sm:$0x1]
        %v752 = vadd.f32 %v742, %v747
        %v753 = vrot.slane %v752, 4
        %v754 = vadd.f32 %v752, %v753
        %v755 = vrot.slane %v754, 2
        %v756 = vadd.f32 %v754, %v755
        %v757 = vrot.slane %v756, 1
        %v758 = vadd.f32 %v756, %v757
        %v759 = vmul.f32 %v742, %v742
        %v760 = vmul.f32 %v747, %v747
        %v761 = vadd.f32 %v759, %v760
        %v762 = vrot.slane %v761, 4
        %v763 = vadd.f32 %v761, %v762
        %v764 = vrot.slane %v763, 2
        %v765 = vadd.f32 %v763, %v764
        %v766 = vrot.slane %v765, 1
        %v767 = vadd.f32 %v765, %v766
        %vm768 = vcmask 1040384
        %v769 = vsel %vm768, %v758, %v767
        %v770 = vld [vmem:[#allocation9] sm:$0xff]
        %v771 = vld [vmem:[#allocation9 + $0x8] sm:$0xff]
        %v772 = vld [vmem:[#allocation9 + $0x10] sm:$0xff]
        %v773 = vld [vmem:[#allocation9 + $0x18] sm:$0xff]
        %v774 = vld [vmem:[#allocation9 + $0x20] sm:$0xff]
        %v775 = vld [vmem:[#allocation9 + $0x28] sm:$0xff]
        %v776 = vld [vmem:[#allocation9 + $0x30] sm:$0xff]
        %v777 = vld [vmem:[#allocation9 + $0x38] sm:$0xff]
        %v778 = vld [vmem:[#allocation9 + $0x40] sm:$0xff]
        %v779 = vld [vmem:[#allocation9 + $0x48] sm:$0xff]
        %v780 = vld [vmem:[#allocation9 + $0x50] sm:$0xff]
        %v781 = vld [vmem:[#allocation9 + $0x58] sm:$0xff]
        %v782 = vld [vmem:[#allocation9 + $0x60] sm:$0xff]
        %v783 = vld [vmem:[#allocation9 + $0x68] sm:$0xff]
        %v784 = vld [vmem:[#allocation9 + $0x70] sm:$0xff]
        %v785 = vld [vmem:[#allocation9 + $0x78] sm:$0xff]
        %786 = vmatprep.subr.mxu0 0.0
        %787 = vmatpush1.msra.mxu0 %v770
        %788 = vmatprep.subr.mxu0 0.0
        %789 = vmatpush1.msra.mxu0 %v771
        %790 = vmatprep.subr.mxu0 0.0
        %791 = vmatpush1.msra.mxu0 %v772
        %792 = vmatprep.subr.mxu0 0.0
        %793 = vmatpush1.msra.mxu0 %v773
        %794 = vmatprep.subr.mxu0 0.0
        %795 = vmatpush1.msra.mxu0 %v774
        %796 = vmatprep.subr.mxu0 0.0
        %797 = vmatpush1.msra.mxu0 %v775
        %798 = vmatprep.subr.mxu0 0.0
        %799 = vmatpush1.msra.mxu0 %v776
        %800 = vmatprep.subr.mxu0 0.0
        %801 = vmatpush1.msra.mxu0 %v777
        %802 = vmatprep.subr.mxu0 0.0
        %803 = vmatpush1.msra.mxu0 %v778
        %804 = vmatprep.subr.mxu0 0.0
        %805 = vmatpush1.msra.mxu0 %v779
        %806 = vmatprep.subr.mxu0 0.0
        %807 = vmatpush1.msra.mxu0 %v780
        %808 = vmatprep.subr.mxu0 0.0
        %809 = vmatpush1.msra.mxu0 %v781
        %810 = vmatprep.subr.mxu0 0.0
        %811 = vmatpush1.msra.mxu0 %v782
        %812 = vmatprep.subr.mxu0 0.0
        %813 = vmatpush1.msra.mxu0 %v783
        %814 = vmatprep.subr.mxu0 0.0
        %815 = vmatpush1.msra.mxu0 %v784
        %816 = vmatprep.subr.mxu0 0.0
        %817 = vmatpush1.msra.mxu0 %v785
        %818 = vmatprep.subr.mxu0 0.0
        %819 = vmatpush1.msra.mxu0 0.0
        %820 = vmatprep.subr.mxu0 0.0
        %821 = vmatpush1.msra.mxu0 0.0
        %822 = vmatprep.subr.mxu0 0.0
        %823 = vmatpush1.msra.mxu0 0.0
        %824 = vmatprep.subr.mxu0 0.0
        %825 = vmatpush1.msra.mxu0 0.0
        %826 = vmatprep.subr.mxu0 0.0
        %827 = vmatpush1.msra.mxu0 0.0
        %828 = vmatprep.subr.mxu0 0.0
        %829 = vmatpush1.msra.mxu0 0.0
        %830 = vmatprep.subr.mxu0 0.0
        %831 = vmatpush1.msra.mxu0 0.0
        %832 = vmatprep.subr.mxu0 0.0
        %833 = vmatpush1.msra.mxu0 0.0
        %834 = vmatprep.subr.mxu0 0.0
        %835 = vmatpush1.msra.mxu0 0.0
        %836 = vmatprep.subr.mxu0 0.0
        %837 = vmatpush1.msra.mxu0 0.0
        %838 = vmatprep.subr.mxu0 0.0
        %839 = vmatpush1.msra.mxu0 0.0
        %840 = vmatprep.subr.mxu0 0.0
        %841 = vmatpush1.msra.mxu0 0.0
        %842 = vmatprep.subr.mxu0 0.0
        %843 = vmatpush1.msra.mxu0 0.0
        %844 = vmatprep.subr.mxu0 0.0
        %845 = vmatpush1.msra.mxu0 0.0
        %846 = vmatprep.subr.mxu0 0.0
        %847 = vmatpush1.msra.mxu0 0.0
        %848 = vmatprep.subr.mxu0 0.0
        %849 = vmatpush1.msra.mxu0 0.0
        %850 = vmatprep.mubr.f32.mxu0 0.0
        %851 = vmatmul.mubr.f32.gmra.mrb[0].mxu0 %v769
        %v852 = vpop.f32.mrb[0].mxu0
        %v853 = vadd.f32 0.0, %v852
        %v854 = vpop.f32.mrb[0].mxu0
        %855 = vdwg.mxu0
        %v856 = vmul.f32 %v853, 0.00048828125
        %v857 = vmul.f32 %v856, %v856
        %v859 = vrot.slane %v857, 7
        %v861 = vsub.f32 %v856, %v859
        %v862 = vmax.f32 %v861, 0.0
        %v863 = vadd.f32 %v862, 1e-05
        %v864 = vrsqrt.pop %v863
        %v866 = vlaneseq
        %v867 = vshrl.u32 %v866, 7
        %v868 = vsub.s32 0, %v867
        %v869 = vrot.slane %v750, %v868
        %v871 = vmul.f32 %v864, %v869
        %v873 = vrot.slane %v871, 1
        %v875 = vmul.f32 %v856, %v873
        %v876 = vsub.f32 %v751, %v875
        %v877 = vlaneseq
        %v878 = vshrl.u32 %v877, 7
        %v879 = vsub.s32 1, %v878
        %v880 = vrot.slane %v871, %v879
        %v881 = vmul.f32 %v742, %v880
        %v882 = vmul.f32 %v747, %v880
        %v884 = vlaneseq
        %v885 = vshrl.u32 %v884, 7
        %v886 = vsub.s32 0, %v885
        %v887 = vrot.slane %v876, %v886
        %v889 = vadd.f32 %v881, %v887
        %v890 = vadd.f32 %v882, %v887
        %v891 = vmax.f32 %v889, 0.0
        %v892 = vmax.f32 %v890, 0.0
        %v893 = vld [vmem:[%s6] sm:$0x1]
        %894 = vst [vmem:[#allocation2 + $0x2] sm:$0xff] %v891
        %895 = vst [vmem:[#allocation2 + $0xa] sm:$0xff] %v892
        %v896 = vld [vmem:[#allocation2] sm:$0xff]
        %v897 = vld [vmem:[#allocation2 + $0x8] sm:$0xff]
        %v898 = vld [vmem:[#allocation2 + $0x1] sm:$0xff]
        %v899 = vld [vmem:[#allocation2 + $0x9] sm:$0xff]
        %v900 = vld [vmem:[#allocation2 + $0x2] sm:$0xff]
        %v901 = vld [vmem:[#allocation2 + $0xa] sm:$0xff]
        %v902 = vld [vmem:[#allocation2 + $0x3] sm:$0xff]
        %v903 = vld [vmem:[#allocation2 + $0xb] sm:$0xff]
        %v904 = vld [vmem:[#allocation2 + $0x4] sm:$0xff]
        %v905 = vld [vmem:[#allocation2 + $0xc] sm:$0xff]
        %v906 = vld [vmem:[#allocation8] sm:$0xff]
        %v907 = vld [vmem:[#allocation8 + $0x8] sm:$0xff]
        %v908 = vld [vmem:[#allocation8 + $0x10] sm:$0xff]
        %v909 = vld [vmem:[#allocation8 + $0x18] sm:$0xff]
        %v910 = vld [vmem:[#allocation8 + $0x20] sm:$0xff]
        %v911 = vld [vmem:[#allocation8 + $0x28] sm:$0xff]
        %v912 = vld [vmem:[#allocation8 + $0x30] sm:$0xff]
        %v913 = vld [vmem:[#allocation8 + $0x38] sm:$0xff]
        %v914 = vld [vmem:[#allocation8 + $0x40] sm:$0xff]
        %v915 = vld [vmem:[#allocation8 + $0x48] sm:$0xff]
        %v916 = vld [vmem:[#allocation8 + $0x50] sm:$0xff]
        %v917 = vld [vmem:[#allocation8 + $0x58] sm:$0xff]
        %v918 = vld [vmem:[#allocation8 + $0x60] sm:$0xff]
        %v919 = vld [vmem:[#allocation8 + $0x68] sm:$0xff]
        %v920 = vld [vmem:[#allocation8 + $0x70] sm:$0xff]
        %v921 = vld [vmem:[#allocation8 + $0x78] sm:$0xff]
        %v922 = vld [vmem:[#allocation8 + $0x80] sm:$0xff]
        %v923 = vld [vmem:[#allocation8 + $0x88] sm:$0xff]
        %v924 = vld [vmem:[#allocation8 + $0x90] sm:$0xff]
        %v925 = vld [vmem:[#allocation8 + $0x98] sm:$0xff]
        %v926 = vld [vmem:[#allocation8 + $0xa0] sm:$0xff]
        %v927 = vld [vmem:[#allocation8 + $0xa8] sm:$0xff]
        %v928 = vld [vmem:[#allocation8 + $0xb0] sm:$0xff]
        %v929 = vld [vmem:[#allocation8 + $0xb8] sm:$0xff]
        %v930 = vld [vmem:[#allocation8 + $0xc0] sm:$0xff]
        %v931 = vld [vmem:[#allocation8 + $0xc8] sm:$0xff]
        %v932 = vld [vmem:[#allocation8 + $0xd0] sm:$0xff]
        %v933 = vld [vmem:[#allocation8 + $0xd8] sm:$0xff]
        %v934 = vld [vmem:[#allocation8 + $0xe0] sm:$0xff]
        %v935 = vld [vmem:[#allocation8 + $0xe8] sm:$0xff]
        %v936 = vld [vmem:[#allocation8 + $0xf0] sm:$0xff]
        %v937 = vld [vmem:[#allocation8 + $0xf8] sm:$0xff]
        %v938 = vld [vmem:[#allocation8 + $0x100] sm:$0xff]
        %v939 = vld [vmem:[#allocation8 + $0x108] sm:$0xff]
        %v940 = vld [vmem:[#allocation8 + $0x110] sm:$0xff]
        %v941 = vld [vmem:[#allocation8 + $0x118] sm:$0xff]
        %v942 = vld [vmem:[#allocation8 + $0x120] sm:$0xff]
        %v943 = vld [vmem:[#allocation8 + $0x128] sm:$0xff]
        %v944 = vld [vmem:[#allocation8 + $0x130] sm:$0xff]
        %v945 = vld [vmem:[#allocation8 + $0x138] sm:$0xff]
        %v946 = vld [vmem:[#allocation8 + $0x140] sm:$0xff]
        %v947 = vld [vmem:[#allocation8 + $0x148] sm:$0xff]
        %v948 = vld [vmem:[#allocation8 + $0x150] sm:$0xff]
        %v949 = vld [vmem:[#allocation8 + $0x158] sm:$0xff]
        %v950 = vld [vmem:[#allocation8 + $0x160] sm:$0xff]
        %v951 = vld [vmem:[#allocation8 + $0x168] sm:$0xff]
        %v952 = vld [vmem:[#allocation8 + $0x170] sm:$0xff]
        %v953 = vld [vmem:[#allocation8 + $0x178] sm:$0xff]
        %v954 = vld [vmem:[#allocation8 + $0x180] sm:$0xff]
        %v955 = vld [vmem:[#allocation8 + $0x188] sm:$0xff]
        %v956 = vld [vmem:[#allocation8 + $0x190] sm:$0xff]
        %v957 = vld [vmem:[#allocation8 + $0x198] sm:$0xff]
        %v958 = vld [vmem:[#allocation8 + $0x1a0] sm:$0xff]
        %v959 = vld [vmem:[#allocation8 + $0x1a8] sm:$0xff]
        %v960 = vld [vmem:[#allocation8 + $0x1b0] sm:$0xff]
        %v961 = vld [vmem:[#allocation8 + $0x1b8] sm:$0xff]
        %v962 = vld [vmem:[#allocation8 + $0x1c0] sm:$0xff]
        %v963 = vld [vmem:[#allocation8 + $0x1c8] sm:$0xff]
        %v964 = vld [vmem:[#allocation8 + $0x1d0] sm:$0xff]
        %v965 = vld [vmem:[#allocation8 + $0x1d8] sm:$0xff]
        %v966 = vld [vmem:[#allocation8 + $0x1e0] sm:$0xff]
        %v967 = vld [vmem:[#allocation8 + $0x1e8] sm:$0xff]
        %v968 = vld [vmem:[#allocation8 + $0x1f0] sm:$0xff]
        %v969 = vld [vmem:[#allocation8 + $0x1f8] sm:$0xff]
        %v970 = vld [vmem:[#allocation8 + $0x200] sm:$0xff]
        %v971 = vld [vmem:[#allocation8 + $0x208] sm:$0xff]
        %v972 = vld [vmem:[#allocation8 + $0x210] sm:$0xff]
        %v973 = vld [vmem:[#allocation8 + $0x218] sm:$0xff]
        %v974 = vld [vmem:[#allocation8 + $0x220] sm:$0xff]
        %v975 = vld [vmem:[#allocation8 + $0x228] sm:$0xff]
        %v976 = vld [vmem:[#allocation8 + $0x230] sm:$0xff]
        %v977 = vld [vmem:[#allocation8 + $0x238] sm:$0xff]
        %v978 = vld [vmem:[#allocation8 + $0x240] sm:$0xff]
        %v979 = vld [vmem:[#allocation8 + $0x248] sm:$0xff]
        %v980 = vld [vmem:[#allocation8 + $0x250] sm:$0xff]
        %v981 = vld [vmem:[#allocation8 + $0x258] sm:$0xff]
        %v982 = vld [vmem:[#allocation8 + $0x260] sm:$0xff]
        %v983 = vld [vmem:[#allocation8 + $0x268] sm:$0xff]
        %v984 = vld [vmem:[#allocation8 + $0x270] sm:$0xff]
        %v985 = vld [vmem:[#allocation8 + $0x278] sm:$0xff]
        %v987 = vlaneseq
        %v988 = vshrl.u32 %v987, 7
        %v989 = vsub.s32 0, %v988
        %v990 = vrot.slane %v893, %v989
        %992 = vmatprep.subr.mxu0 0.0
        %993 = vmatpush1.msra.mxu0 %v906
        %994 = vmatprep.subr.mxu0 0.0
        %995 = vmatpush1.msra.mxu0 %v907
        %996 = vmatprep.subr.mxu0 0.0
        %997 = vmatpush1.msra.mxu0 %v908
        %998 = vmatprep.subr.mxu0 0.0
        %999 = vmatpush1.msra.mxu0 %v909
        %1000 = vmatprep.subr.mxu0 0.0
        %1001 = vmatpush1.msra.mxu0 %v910
        %1002 = vmatprep.subr.mxu0 0.0
        %1003 = vmatpush1.msra.mxu0 %v911
        %1004 = vmatprep.subr.mxu0 0.0
        %1005 = vmatpush1.msra.mxu0 %v912
        %1006 = vmatprep.subr.mxu0 0.0
        %1007 = vmatpush1.msra.mxu0 %v913
        %1008 = vmatprep.subr.mxu0 0.0
        %1009 = vmatpush1.msra.mxu0 %v914
        %1010 = vmatprep.subr.mxu0 0.0
        %1011 = vmatpush1.msra.mxu0 %v915
        %1012 = vmatprep.subr.mxu0 0.0
        %1013 = vmatpush1.msra.mxu0 %v916
        %1014 = vmatprep.subr.mxu0 0.0
        %1015 = vmatpush1.msra.mxu0 %v917
        %1016 = vmatprep.subr.mxu0 0.0
        %1017 = vmatpush1.msra.mxu0 %v918
        %1018 = vmatprep.subr.mxu0 0.0
        %1019 = vmatpush1.msra.mxu0 %v919
        %1020 = vmatprep.subr.mxu0 0.0
        %1021 = vmatpush1.msra.mxu0 %v920
        %1022 = vmatprep.subr.mxu0 0.0
        %1023 = vmatpush1.msra.mxu0 %v921
        %1024 = vmatprep.subr.mxu0 0.0
        %1025 = vmatpush1.msra.mxu0 %v922
        %1026 = vmatprep.subr.mxu0 0.0
        %1027 = vmatpush1.msra.mxu0 %v923
        %1028 = vmatprep.subr.mxu0 0.0
        %1029 = vmatpush1.msra.mxu0 %v924
        %1030 = vmatprep.subr.mxu0 0.0
        %1031 = vmatpush1.msra.mxu0 %v925
        %1032 = vmatprep.subr.mxu0 0.0
        %1033 = vmatpush1.msra.mxu0 %v926
        %1034 = vmatprep.subr.mxu0 0.0
        %1035 = vmatpush1.msra.mxu0 %v927
        %1036 = vmatprep.subr.mxu0 0.0
        %1037 = vmatpush1.msra.mxu0 %v928
        %1038 = vmatprep.subr.mxu0 0.0
        %1039 = vmatpush1.msra.mxu0 %v929
        %1040 = vmatprep.subr.mxu0 0.0
        %1041 = vmatpush1.msra.mxu0 %v930
        %1042 = vmatprep.subr.mxu0 0.0
        %1043 = vmatpush1.msra.mxu0 %v931
        %1044 = vmatprep.subr.mxu0 0.0
        %1045 = vmatpush1.msra.mxu0 %v932
        %1046 = vmatprep.subr.mxu0 0.0
        %1047 = vmatpush1.msra.mxu0 %v933
        %1048 = vmatprep.subr.mxu0 0.0
        %1049 = vmatpush1.msra.mxu0 %v934
        %1050 = vmatprep.subr.mxu0 0.0
        %1051 = vmatpush1.msra.mxu0 %v935
        %1052 = vmatprep.subr.mxu0 0.0
        %1053 = vmatpush1.msra.mxu0 %v936
        %1054 = vmatprep.subr.mxu0 0.0
        %1055 = vmatpush1.msra.mxu0 %v937
        %1056 = vmatprep.mubr.f32.mxu0 %v898
        %1057 = vmatmul.mubr.f32.gmra.mrb[0].mxu0 %v896
        %v1058 = vpop.f32.mrb[0].mxu0
        %v1059 = vadd.f32 %v990, %v1058
        %v1060 = vpop.f32.mrb[0].mxu0
        %1061 = vmatprep.mubr.f32.mxu0 %v899
        %1062 = vmatmul.mubr.f32.gmra.mrb[0].mxu0 %v897
        %v1063 = vpop.f32.mrb[0].mxu0
        %v1064 = vadd.f32 %v990, %v1063
        %v1065 = vpop.f32.mrb[0].mxu0
        %1066 = vdwg.mxu0
        %1067 = vmatprep.subr.mxu0 0.0
        %1068 = vmatpush1.msra.mxu0 %v938
        %1069 = vmatprep.subr.mxu0 0.0
        %1070 = vmatpush1.msra.mxu0 %v939
        %1071 = vmatprep.subr.mxu0 0.0
        %1072 = vmatpush1.msra.mxu0 %v940
        %1073 = vmatprep.subr.mxu0 0.0
        %1074 = vmatpush1.msra.mxu0 %v941
        %1075 = vmatprep.subr.mxu0 0.0
        %1076 = vmatpush1.msra.mxu0 %v942
        %1077 = vmatprep.subr.mxu0 0.0
        %1078 = vmatpush1.msra.mxu0 %v943
        %1079 = vmatprep.subr.mxu0 0.0
        %1080 = vmatpush1.msra.mxu0 %v944
        %1081 = vmatprep.subr.mxu0 0.0
        %1082 = vmatpush1.msra.mxu0 %v945
        %1083 = vmatprep.subr.mxu0 0.0
        %1084 = vmatpush1.msra.mxu0 %v946
        %1085 = vmatprep.subr.mxu0 0.0
        %1086 = vmatpush1.msra.mxu0 %v947
        %1087 = vmatprep.subr.mxu0 0.0
        %1088 = vmatpush1.msra.mxu0 %v948
        %1089 = vmatprep.subr.mxu0 0.0
        %1090 = vmatpush1.msra.mxu0 %v949
        %1091 = vmatprep.subr.mxu0 0.0
        %1092 = vmatpush1.msra.mxu0 %v950
        %1093 = vmatprep.subr.mxu0 0.0
        %1094 = vmatpush1.msra.mxu0 %v951
        %1095 = vmatprep.subr.mxu0 0.0
        %1096 = vmatpush1.msra.mxu0 %v952
        %1097 = vmatprep.subr.mxu0 0.0
        %1098 = vmatpush1.msra.mxu0 %v953
        %1099 = vmatprep.subr.mxu0 0.0
        %1100 = vmatpush1.msra.mxu0 %v954
        %1101 = vmatprep.subr.mxu0 0.0
        %1102 = vmatpush1.msra.mxu0 %v955
        %1103 = vmatprep.subr.mxu0 0.0
        %1104 = vmatpush1.msra.mxu0 %v956
        %1105 = vmatprep.subr.mxu0 0.0
        %1106 = vmatpush1.msra.mxu0 %v957
        %1107 = vmatprep.subr.mxu0 0.0
        %1108 = vmatpush1.msra.mxu0 %v958
        %1109 = vmatprep.subr.mxu0 0.0
        %1110 = vmatpush1.msra.mxu0 %v959
        %1111 = vmatprep.subr.mxu0 0.0
        %1112 = vmatpush1.msra.mxu0 %v960
        %1113 = vmatprep.subr.mxu0 0.0
        %1114 = vmatpush1.msra.mxu0 %v961
        %1115 = vmatprep.subr.mxu0 0.0
        %1116 = vmatpush1.msra.mxu0 %v962
        %1117 = vmatprep.subr.mxu0 0.0
        %1118 = vmatpush1.msra.mxu0 %v963
        %1119 = vmatprep.subr.mxu0 0.0
        %1120 = vmatpush1.msra.mxu0 %v964
        %1121 = vmatprep.subr.mxu0 0.0
        %1122 = vmatpush1.msra.mxu0 %v965
        %1123 = vmatprep.subr.mxu0 0.0
        %1124 = vmatpush1.msra.mxu0 %v966
        %1125 = vmatprep.subr.mxu0 0.0
        %1126 = vmatpush1.msra.mxu0 %v967
        %1127 = vmatprep.subr.mxu0 0.0
        %1128 = vmatpush1.msra.mxu0 %v968
        %1129 = vmatprep.subr.mxu0 0.0
        %1130 = vmatpush1.msra.mxu0 %v969
        %1131 = vmatprep.mubr.f32.mxu0 %v902
        %1132 = vmatmul.mubr.f32.gmra.mrb[0].mxu0 %v900
        %v1133 = vpop.f32.mrb[0].mxu0
        %v1134 = vadd.f32 %v1059, %v1133
        %v1135 = vpop.f32.mrb[0].mxu0
        %1136 = vmatprep.mubr.f32.mxu0 %v903
        %1137 = vmatmul.mubr.f32.gmra.mrb[0].mxu0 %v901
        %v1138 = vpop.f32.mrb[0].mxu0
        %v1139 = vadd.f32 %v1064, %v1138
        %v1140 = vpop.f32.mrb[0].mxu0
        %1141 = vdwg.mxu0
        %1142 = vmatprep.subr.mxu0 0.0
        %1143 = vmatpush1.msra.mxu0 %v970
        %1144 = vmatprep.subr.mxu0 0.0
        %1145 = vmatpush1.msra.mxu0 %v971
        %1146 = vmatprep.subr.mxu0 0.0
        %1147 = vmatpush1.msra.mxu0 %v972
        %1148 = vmatprep.subr.mxu0 0.0
        %1149 = vmatpush1.msra.mxu0 %v973
        %1150 = vmatprep.subr.mxu0 0.0
        %1151 = vmatpush1.msra.mxu0 %v974
        %1152 = vmatprep.subr.mxu0 0.0
        %1153 = vmatpush1.msra.mxu0 %v975
        %1154 = vmatprep.subr.mxu0 0.0
        %1155 = vmatpush1.msra.mxu0 %v976
        %1156 = vmatprep.subr.mxu0 0.0
        %1157 = vmatpush1.msra.mxu0 %v977
        %1158 = vmatprep.subr.mxu0 0.0
        %1159 = vmatpush1.msra.mxu0 %v978
        %1160 = vmatprep.subr.mxu0 0.0
        %1161 = vmatpush1.msra.mxu0 %v979
        %1162 = vmatprep.subr.mxu0 0.0
        %1163 = vmatpush1.msra.mxu0 %v980
        %1164 = vmatprep.subr.mxu0 0.0
        %1165 = vmatpush1.msra.mxu0 %v981
        %1166 = vmatprep.subr.mxu0 0.0
        %1167 = vmatpush1.msra.mxu0 %v982
        %1168 = vmatprep.subr.mxu0 0.0
        %1169 = vmatpush1.msra.mxu0 %v983
        %1170 = vmatprep.subr.mxu0 0.0
        %1171 = vmatpush1.msra.mxu0 %v984
        %1172 = vmatprep.subr.mxu0 0.0
        %1173 = vmatpush1.msra.mxu0 %v985
        %1174 = vmatprep.subr.mxu0 0.0
        %1175 = vmatpush1.msra.mxu0 0.0
        %1176 = vmatprep.subr.mxu0 0.0
        %1177 = vmatpush1.msra.mxu0 0.0
        %1178 = vmatprep.subr.mxu0 0.0
        %1179 = vmatpush1.msra.mxu0 0.0
        %1180 = vmatprep.subr.mxu0 0.0
        %1181 = vmatpush1.msra.mxu0 0.0
        %1182 = vmatprep.subr.mxu0 0.0
        %1183 = vmatpush1.msra.mxu0 0.0
        %1184 = vmatprep.subr.mxu0 0.0
        %1185 = vmatpush1.msra.mxu0 0.0
        %1186 = vmatprep.subr.mxu0 0.0
        %1187 = vmatpush1.msra.mxu0 0.0
        %1188 = vmatprep.subr.mxu0 0.0
        %1189 = vmatpush1.msra.mxu0 0.0
        %1190 = vmatprep.subr.mxu0 0.0
        %1191 = vmatpush1.msra.mxu0 0.0
        %1192 = vmatprep.subr.mxu0 0.0
        %1193 = vmatpush1.msra.mxu0 0.0
        %1194 = vmatprep.subr.mxu0 0.0
        %1195 = vmatpush1.msra.mxu0 0.0
        %1196 = vmatprep.subr.mxu0 0.0
        %1197 = vmatpush1.msra.mxu0 0.0
        %1198 = vmatprep.subr.mxu0 0.0
        %1199 = vmatpush1.msra.mxu0 0.0
        %1200 = vmatprep.subr.mxu0 0.0
        %1201 = vmatpush1.msra.mxu0 0.0
        %1202 = vmatprep.subr.mxu0 0.0
        %1203 = vmatpush1.msra.mxu0 0.0
        %1204 = vmatprep.subr.mxu0 0.0
        %1205 = vmatpush1.msra.mxu0 0.0
        %1206 = vmatprep.mubr.f32.mxu0 0.0
        %1207 = vmatmul.mubr.f32.gmra.mrb[0].mxu0 %v904
        %v1208 = vpop.f32.mrb[0].mxu0
        %v1209 = vadd.f32 %v1134, %v1208
        %v1210 = vpop.f32.mrb[0].mxu0
        %1211 = vmatprep.mubr.f32.mxu0 0.0
        %1212 = vmatmul.mubr.f32.gmra.mrb[0].mxu0 %v905
        %v1213 = vpop.f32.mrb[0].mxu0
        %v1214 = vadd.f32 %v1139, %v1213
        %v1215 = vpop.f32.mrb[0].mxu0
        %1216 = vdwg.mxu0
        %v1217 = vld [vmem:[%s7] sm:$0x1]
        %v1218 = vld [vmem:[%s8] sm:$0x1]
        %v1219 = vadd.f32 %v1209, %v1214
        %v1220 = vrot.slane %v1219, 4
        %v1221 = vadd.f32 %v1219, %v1220
        %v1222 = vrot.slane %v1221, 2
        %v1223 = vadd.f32 %v1221, %v1222
        %v1224 = vrot.slane %v1223, 1
        %v1225 = vadd.f32 %v1223, %v1224
        %v1226 = vmul.f32 %v1209, %v1209
        %v1227 = vmul.f32 %v1214, %v1214
        %v1228 = vadd.f32 %v1226, %v1227
        %v1229 = vrot.slane %v1228, 4
        %v1230 = vadd.f32 %v1228, %v1229
        %v1231 = vrot.slane %v1230, 2
        %v1232 = vadd.f32 %v1230, %v1231
        %v1233 = vrot.slane %v1232, 1
        %v1234 = vadd.f32 %v1232, %v1233
        %v1235 = vsel %vm768, %v1225, %v1234
        %v1236 = vld [vmem:[#allocation9] sm:$0xff]
        %v1237 = vld [vmem:[#allocation9 + $0x8] sm:$0xff]
        %v1238 = vld [vmem:[#allocation9 + $0x10] sm:$0xff]
        %v1239 = vld [vmem:[#allocation9 + $0x18] sm:$0xff]
        %v1240 = vld [vmem:[#allocation9 + $0x20] sm:$0xff]
        %v1241 = vld [vmem:[#allocation9 + $0x28] sm:$0xff]
        %v1242 = vld [vmem:[#allocation9 + $0x30] sm:$0xff]
        %v1243 = vld [vmem:[#allocation9 + $0x38] sm:$0xff]
        %v1244 = vld [vmem:[#allocation9 + $0x40] sm:$0xff]
        %v1245 = vld [vmem:[#allocation9 + $0x48] sm:$0xff]
        %v1246 = vld [vmem:[#allocation9 + $0x50] sm:$0xff]
        %v1247 = vld [vmem:[#allocation9 + $0x58] sm:$0xff]
        %v1248 = vld [vmem:[#allocation9 + $0x60] sm:$0xff]
        %v1249 = vld [vmem:[#allocation9 + $0x68] sm:$0xff]
        %v1250 = vld [vmem:[#allocation9 + $0x70] sm:$0xff]
        %v1251 = vld [vmem:[#allocation9 + $0x78] sm:$0xff]
        %1252 = vmatprep.subr.mxu0 0.0
        %1253 = vmatpush1.msra.mxu0 %v1236
        %1254 = vmatprep.subr.mxu0 0.0
        %1255 = vmatpush1.msra.mxu0 %v1237
        %1256 = vmatprep.subr.mxu0 0.0
        %1257 = vmatpush1.msra.mxu0 %v1238
        %1258 = vmatprep.subr.mxu0 0.0
        %1259 = vmatpush1.msra.mxu0 %v1239
        %1260 = vmatprep.subr.mxu0 0.0
        %1261 = vmatpush1.msra.mxu0 %v1240
        %1262 = vmatprep.subr.mxu0 0.0
        %1263 = vmatpush1.msra.mxu0 %v1241
        %1264 = vmatprep.subr.mxu0 0.0
        %1265 = vmatpush1.msra.mxu0 %v1242
        %1266 = vmatprep.subr.mxu0 0.0
        %1267 = vmatpush1.msra.mxu0 %v1243
        %1268 = vmatprep.subr.mxu0 0.0
        %1269 = vmatpush1.msra.mxu0 %v1244
        %1270 = vmatprep.subr.mxu0 0.0
        %1271 = vmatpush1.msra.mxu0 %v1245
        %1272 = vmatprep.subr.mxu0 0.0
        %1273 = vmatpush1.msra.mxu0 %v1246
        %1274 = vmatprep.subr.mxu0 0.0
        %1275 = vmatpush1.msra.mxu0 %v1247
        %1276 = vmatprep.subr.mxu0 0.0
        %1277 = vmatpush1.msra.mxu0 %v1248
        %1278 = vmatprep.subr.mxu0 0.0
        %1279 = vmatpush1.msra.mxu0 %v1249
        %1280 = vmatprep.subr.mxu0 0.0
        %1281 = vmatpush1.msra.mxu0 %v1250
        %1282 = vmatprep.subr.mxu0 0.0
        %1283 = vmatpush1.msra.mxu0 %v1251
        %1284 = vmatprep.subr.mxu0 0.0
        %1285 = vmatpush1.msra.mxu0 0.0
        %1286 = vmatprep.subr.mxu0 0.0
        %1287 = vmatpush1.msra.mxu0 0.0
        %1288 = vmatprep.subr.mxu0 0.0
        %1289 = vmatpush1.msra.mxu0 0.0
        %1290 = vmatprep.subr.mxu0 0.0
        %1291 = vmatpush1.msra.mxu0 0.0
        %1292 = vmatprep.subr.mxu0 0.0
        %1293 = vmatpush1.msra.mxu0 0.0
        %1294 = vmatprep.subr.mxu0 0.0
        %1295 = vmatpush1.msra.mxu0 0.0
        %1296 = vmatprep.subr.mxu0 0.0
        %1297 = vmatpush1.msra.mxu0 0.0
        %1298 = vmatprep.subr.mxu0 0.0
        %1299 = vmatpush1.msra.mxu0 0.0
        %1300 = vmatprep.subr.mxu0 0.0
        %1301 = vmatpush1.msra.mxu0 0.0
        %1302 = vmatprep.subr.mxu0 0.0
        %1303 = vmatpush1.msra.mxu0 0.0
        %1304 = vmatprep.subr.mxu0 0.0
        %1305 = vmatpush1.msra.mxu0 0.0
        %1306 = vmatprep.subr.mxu0 0.0
        %1307 = vmatpush1.msra.mxu0 0.0
        %1308 = vmatprep.subr.mxu0 0.0
        %1309 = vmatpush1.msra.mxu0 0.0
        %1310 = vmatprep.subr.mxu0 0.0
        %1311 = vmatpush1.msra.mxu0 0.0
        %1312 = vmatprep.subr.mxu0 0.0
        %1313 = vmatpush1.msra.mxu0 0.0
        %1314 = vmatprep.subr.mxu0 0.0
        %1315 = vmatpush1.msra.mxu0 0.0
        %1316 = vmatprep.mubr.f32.mxu0 0.0
        %1317 = vmatmul.mubr.f32.gmra.mrb[0].mxu0 %v1235
        %v1318 = vpop.f32.mrb[0].mxu0
        %v1319 = vadd.f32 0.0, %v1318
        %v1320 = vpop.f32.mrb[0].mxu0
        %1321 = vdwg.mxu0
        %v1322 = vmul.f32 %v1319, 0.00048828125
        %v1323 = vmul.f32 %v1322, %v1322
        %v1325 = vrot.slane %v1323, 7
        %v1327 = vsub.f32 %v1322, %v1325
        %v1328 = vmax.f32 %v1327, 0.0
        %v1329 = vadd.f32 %v1328, 1e-05
        %v1330 = vrsqrt.pop %v1329
        %v1332 = vlaneseq
        %v1333 = vshrl.u32 %v1332, 7
        %v1334 = vsub.s32 0, %v1333
        %v1335 = vrot.slane %v1217, %v1334
        %v1337 = vmul.f32 %v1330, %v1335
        %v1339 = vrot.slane %v1337, 1
        %v1341 = vmul.f32 %v1322, %v1339
        %v1342 = vsub.f32 %v1218, %v1341
        %v1343 = vlaneseq
        %v1344 = vshrl.u32 %v1343, 7
        %v1345 = vsub.s32 1, %v1344
        %v1346 = vrot.slane %v1337, %v1345
        %v1347 = vmul.f32 %v1209, %v1346
        %v1348 = vmul.f32 %v1214, %v1346
        %v1350 = vlaneseq
        %v1351 = vshrl.u32 %v1350, 7
        %v1352 = vsub.s32 0, %v1351
        %v1353 = vrot.slane %v1342, %v1352
        %v1355 = vadd.f32 %v1347, %v1353
        %v1356 = vadd.f32 %v1348, %v1353
        %v1357 = vmax.f32 %v1355, 0.0
        %v1358 = vmax.f32 %v1356, 0.0
        %v1359 = vadd.f32 %v424, %v1357
        %v1360 = vadd.f32 %v425, %v1358
        %v1361 = vmax.f32 %v1359, 0.0
        %v1362 = vmax.f32 %v1360, 0.0
        %1363 = vst [vmem:[%s421] sm:$0xff] %v1361
        %1364 = vst [vmem:[%s421 + $0x8] sm:$0xff] %v1362
        %s1365 = sand.u32 %s252, 1
        %s1366 = scalar_lea.sflag [#allocation5], %s1365
        %s1367 = sand.u32 %s252, 1
        %s1368 = smul.addr %s1367, 16
        %s1369 = scalar_lea.vmem [#allocation11], %s1368
        // Predicated region
        $region77: #{tpu_custom_call.1} parent=59 // pred_check
          %p1370 = pneg %p262
        $region78: #{tpu_custom_call.1} parent=59 // pred_check_branch
          %1372 = sbr.rel (%p1370) target = $region80
        $region79: #{tpu_custom_call.1} parent=59 // pred_region
          %s1374 = ssub.s32 256, 256
          %1375 = vsyncadd %s1366, %s1374
          %s1376 = smul.addr %s29, 2
          %s1377 = smul.addr %s1376, 128
          %s1378 = scalar_lea.hbm %s10, %s1377
          %s1379 = sshll.u32 %s1369, 4
          %s1380 = int_to_ptr.vmem [resolvable:$true] %s1379
          %1385 = dma.vmem_to_hbm [thread:$0]  %s1380, 256, %s1378, %s1366, 128, 128, 8
        $region80: #{tpu_custom_call.1} parent=59 // pred_fallthru
          _
      $region60: #{tpu_custom_call.1} parent=5 // pred_fallthru
        _
      %p1386 = scmp.le.s32.totalorder 2, %s24
      // Predicated region
      $region81: #{tpu_custom_call.1} parent=5 // pred_check
        %p1387 = pneg %p1386
      $region82: #{tpu_custom_call.1} parent=5 // pred_check_branch
        %1389 = sbr.rel (%p1387) target = $region84
      $region83: #{tpu_custom_call.1} parent=5 // pred_region
        %s1390 = ssub.s32 %s24, 2
        // Predicated region
        $region85: #{tpu_custom_call.1} parent=83 // pred_check
          %p1391 = pneg %p268
        $region86: #{tpu_custom_call.1} parent=83 // pred_check_branch
          %1393 = sbr.rel (%p1391) target = $region88
        $region87: #{tpu_custom_call.1} parent=83 // pred_region
          %s1394 = sand.u32 %s253, 1
          %s1395 = scalar_lea.sflag [#allocation5], %s1394
          %s1396 = sand.u32 %s253, 1
          %s1397 = smul.addr %s1396, 16
          %s1398 = scalar_lea.vmem [#allocation11], %s1397
          %1399 = dma.done %s1395, 256
        $region88: #{tpu_custom_call.1} parent=83 // pred_fallthru
          _
      $region84: #{tpu_custom_call.1} parent=5 // pred_fallthru
        _
    $region6: #{tpu_custom_call.1} parent=1 // loop_footer
      %s28 = sadd.s32 1, %s24
    $region7: #{tpu_custom_call.1} parent=1 // loop_footer_branch
      %23 = sbr.rel target = $region3
    $region8: #{tpu_custom_call.1} parent=1 // loop_exit
      _
    %1400 = vsyncpa [#allocation4], 1
    %s1401 = scalar_lea.sflag [#allocation4], 1
    %1402 = vsyncpa %s1401, 1
    %1403 = vsyncpa [#allocation7], 1
    %1404 = vsyncpa [#allocation10], 1
    %1405 = vsyncpa [#allocation5], 1
    %s1406 = scalar_lea.sflag [#allocation5], 1
    %1407 = vsyncpa %s1406, 1

</llo_original>
